<compile_context>
chip_gen: v5e
topology: v5e:2x2
jax: 0.10.0
libtpu: 0.0.40
codegen_flags: <defaults>
</compile_context>

<pallas_src>
import functools

import jax
import jax.numpy as jnp
from jax import lax
from jax.experimental import pallas as pl
from jax.experimental.pallas import tpu as pltpu


def _round_half_even(x):
    """Round-half-to-even (== Python round / torch.round / jnp.round) built from
    floor/compare/select so it lowers cleanly in Mosaic."""
    f = jnp.floor(x)
    r = x - f
    half_f = f * 0.5
    f_is_odd = half_f != jnp.floor(half_f)
    round_up = (r > 0.5) | ((r == 0.5) & f_is_odd)
    return f + round_up.astype(x.dtype)


# ----------------------------------------------------------------------------
# Fused kernel: p-head + MXU one-hot window gather + softmax + gaussian + ctx
# grid = (batch tiles ["parallel"], sequence tiles ["arbitrary" reduction, last])
# ----------------------------------------------------------------------------
def fused_local_attn_kernel(hidden_ref, enc_ref, wp_w_ref, wp_b_ref,
                            vp_row_ref, vp_b_ref, weights_ref, ctx_ref,
                            win_acc_ref, *, D, seq_len, seq_tile):
    si = pl.program_id(1)

    @pl.when(si == 0)
    def _init():
        win_acc_ref[...] = jnp.zeros_like(win_acc_ref)

    h = hidden_ref[...]                                    # (TB, Dh) f32
    enc = enc_ref[...]                                     # (TB, TS, E) f32
    TB = h.shape[0]
    W = 2 * D + 1

    # --- p = S * sigmoid(vp(tanh(Wp h)))   (recomputed per S step: trivially cheap;
    #     tanh/sigmoid go to the EUP slot).  vp is a 1-column linear layer, so it is a
    #     VPU multiply + lane reduce instead of a 1-column MXU matmul.
    wph = jnp.tanh(jnp.dot(h, wp_w_ref[...],
                           preferred_element_type=jnp.float32) + wp_b_ref[...])   # (TB, H)
    logit = jnp.sum(wph * vp_row_ref[...], axis=-1, keepdims=True) + vp_b_ref[...]
    p = float(seq_len) * jax.nn.sigmoid(logit)             # (TB, 1)

    # --- window centers: round-half-even == Python round() used in slice_windows
    center = _round_half_even(p)                           # (TB, 1)

    # --- window slot positions in original-sequence coords: pos[b, j] = center_b - D + j
    j_iota = lax.broadcasted_iota(jnp.int32, (TB, W), 1)
    pos = j_iota + center.astype(jnp.int32) - D            # (TB, W) int32

    # --- one-hot selector against THIS sequence tile (sequence on the lane axis):
    #       onehot[b, j, s] = (si*TS + s == pos[b, j])
    #     positions outside [0, S) match nothing -> zero slab rows, i.e. exactly the zero
    #     padding of the PyTorch reference (score 0, zero context contribution).
    s_glob = lax.broadcasted_iota(jnp.int32, (TB, W, seq_tile), 2) + si * seq_tile
    onehot = (s_glob == pos[:, :, None]).astype(jnp.float32)          # (TB, W, TS)

    # --- MXU gather of the per-batch (W, E) encoder window slab, accumulated over S tiles
    win_acc_ref[...] += jnp.einsum('bws,bse->bwe', onehot, enc,
                                   preferred_element_type=jnp.float32)

    @pl.when(si == pl.num_programs(1) - 1)
    def _finalize():
        win = win_acc_ref[...]                             # (TB, W, E)

        # Luong dot scores inside the window (tiny: TB x W x E)
        scores = jnp.sum(win * h[:, None, :], axis=-1)     # (TB, W)

        # softmax over the window (dim=1 in the PyTorch code); exact divide on purpose
        m = jnp.max(scores, axis=-1, keepdims=True)
        e = jnp.exp(scores - m)
        attn = e / jnp.sum(e, axis=-1, keepdims=True)      # (TB, W)

        # gaussian re-weighting around p:  exp(-(pos - p)^2 / (2 * (D/2)^2))
        inv_two_sigma_sq = 1.0 / (2.0 * (D / 2.0) ** 2)
        gauss = jnp.exp(-inv_two_sigma_sq * (pos.astype(jnp.float32) - p) ** 2)
        scaled = attn * gauss                              # (TB, W)

        # context from the window slab (tiny contraction over W)
        ctx = jnp.sum(scaled[:, :, None] * win, axis=1)    # (TB, E)

        weights_ref[...] = scaled                          # lane-dense (TB, W) store
        ctx_ref[...] = ctx                                 # lane-dense (TB, E) store


# ----------------------------------------------------------------------------
# Tile / VMEM sizing helpers
# ----------------------------------------------------------------------------
def _divisor_tile(n, cap):
    """Largest multiple-of-8 divisor of n that is <= cap (None if there is none)."""
    best = None
    t = 8
    while t <= min(n, cap):
        if n % t == 0:
            best = t
        t += 8
    return best


def _padded_bytes(shape, itemsize=4):
    """f32 VMEM footprint of a block after (8, 128) sublane/lane tiling."""
    s = list(shape)
    s[-1] = -(-s[-1] // 128) * 128
    if len(s) >= 2:
        s[-2] = -(-s[-2] // 8) * 8
    n = itemsize
    for d in s:
        n *= d
    return n


# ----------------------------------------------------------------------------
# Wrapper mirroring LocalPredictiveAttention.forward
# ----------------------------------------------------------------------------
def local_predictive_attention(t, hidden, encoder_outputs, params, D,
                               *, batch_tile=None, seq_tile=None):
    del t  # the predictive variant ignores t
    S, B, E = encoder_outputs.shape
    W = 2 * D + 1
    Wp_w, Wp_b, vp_w, vp_b = params
    Dh = hidden.shape[1]
    H = Wp_w.shape[1]

    # (B, S, E) layout so the LEADING batch dim is tiled -> contiguous per-step DMA.
    enc_bse = jnp.transpose(encoder_outputs, (1, 0, 2))
    vp_row = vp_w.reshape(1, H)            # vp weight as a broadcast row for the VPU reduce

    # Batch tile: multiple of 8 (f32 sublanes) dividing B, <= B//2 when B >= 16 so the
    # "parallel" axis has >= 2 steps (double-buffering + v7x megacore). Fallback TB = B
    # (block == full dim is always legal; small-batch case).
    if batch_tile is None:
        batch_tile = _divisor_tile(B, B // 2 if B >= 16 else B) or B
    TB = batch_tile
    assert B % TB == 0, "batch_tile must divide the batch size"

    # Sequence tile: bound the double-buffered (TB, TS, E) encoder slab to a few MiB so
    # the footprint also fits v7x's 64 MiB VMEM (not just v5e/v6e's 128 MiB).
    if seq_tile is None:
        enc_row_bytes = _padded_bytes((TB, 8, E)) // 8         # bytes per sequence row
        cap = max(8, (2 * 1024 * 1024) // max(enc_row_bytes, 1))
        seq_tile = _divisor_tile(S, min(S, cap)) or S
    TS = seq_tile
    assert S % TS == 0, "seq_tile must divide the sequence length"

    grid = (B // TB, S // TS)

    # VMEM limit derived from the actual (padded) block sizes + temporaries headroom.
    blocks = [(TB, Dh), (TB, TS, E), (Dh, H), (1, H), (1, H), (1, 1), (TB, W), (TB, E)]
    need = 2 * sum(_padded_bytes(s) for s in blocks)           # double-buffered blocks
    need += _padded_bytes((TB, W, E))                          # accumulator scratch
    need += 4 * (_padded_bytes((TB, W, TS)) + _padded_bytes((TB, W, E)))  # temporaries
    vmem_limit = int(min(max(2 * need, 16 * 1024 * 1024), 32 * 1024 * 1024))

    cost = pl.CostEstimate(
        flops=2 * B * S * W * E + 2 * B * Dh * H + 4 * B * W * E,
        transcendentals=B * (H + 1 + 2 * W),
        bytes_accessed=4 * (B * S * E + B * Dh + B * W + B * E + Dh * H + 2 * H + 1))

    kernel = functools.partial(fused_local_attn_kernel, D=D, seq_len=S, seq_tile=TS)
    attn_weights, context = pl.pallas_call(
        kernel,
        out_shape=(jax.ShapeDtypeStruct((B, W), jnp.float32),
                   jax.ShapeDtypeStruct((B, E), jnp.float32)),
        grid=grid,
        in_specs=[
            pl.BlockSpec((TB, Dh), lambda bi, si: (bi, 0)),         # hidden
            pl.BlockSpec((TB, TS, E), lambda bi, si: (bi, si, 0)),  # encoder (B, S, E)
            pl.BlockSpec((Dh, H), lambda bi, si: (0, 0)),           # Wp weight
            pl.BlockSpec((1, H), lambda bi, si: (0, 0)),            # Wp bias
            pl.BlockSpec((1, H), lambda bi, si: (0, 0)),            # vp weight (row)
            pl.BlockSpec((1, 1), lambda bi, si: (0, 0)),            # vp bias
        ],
        out_specs=(pl.BlockSpec((TB, W), lambda bi, si: (bi, 0)),
                   pl.BlockSpec((TB, E), lambda bi, si: (bi, 0))),
        scratch_shapes=[pltpu.VMEM((TB, W, E), jnp.float32)],       # window-slab accumulator
        compiler_params=pltpu.CompilerParams(
            dimension_semantics=("parallel", "arbitrary"),
            vmem_limit_bytes=vmem_limit),
        cost_estimate=cost,
    )(hidden, enc_bse, Wp_w, Wp_b, vp_row, vp_b)
    return attn_weights, context


# ----------------------------------------------------------------------------
# Pure-JAX reference (mirrors the PyTorch forward semantics)
# ----------------------------------------------------------------------------
def reference(hidden, enc, Wp_w, Wp_b, vp_w, vp_b, D):
    S, B, E = enc.shape
    W = 2 * D + 1
    wph = jnp.tanh(hidden @ Wp_w + Wp_b)
    p = (S * jax.nn.sigmoid(wph @ vp_w + vp_b))[:, 0]
    centers = jnp.round(p).astype(jnp.int32)
    enc_pad = jnp.concatenate(
        [jnp.zeros((D, B, E), enc.dtype), enc, jnp.zeros((D + 1, B, E), enc.dtype)], axis=0)
    ws, cs = [], []
    for b in range(B):
        c = int(centers[b])
        win = enc_pad[c:c + W, b, :]                                  # (W, E)
        scores = win @ hidden[b]
        attn = jax.nn.softmax(scores)
        pos = jnp.arange(W, dtype=jnp.float32) + (c - D)
        gauss = jnp.exp(-(pos - p[b]) ** 2 / (2.0 * (D / 2.0) ** 2))
        sw = attn * gauss
        ws.append(sw)
        cs.append(sw @ win)
    return jnp.stack(ws, 0), jnp.stack(cs, 0)


if __name__ == "__main__":
    # batch, seq_len, enc/dec hidden, Wp hidden, half-width  (dot score => Dh == E)
    B, S, E, H, D = 16, 16, 32, 16, 2
    Dh = E

    key = jax.random.PRNGKey(0)
    k1, k2, k3, k4, k5, k6 = jax.random.split(key, 6)
    hidden = jax.random.normal(k1, (B, Dh), jnp.float32)
    encoder_outputs = jax.random.normal(k2, (S, B, E), jnp.float32)

    # deterministic parameter init (nn.Linear shapes; stored as (in, out) for x @ W)
    bound1 = 1.0 / (Dh ** 0.5)
    Wp_w = jax.random.uniform(k3, (Dh, H), jnp.float32, -bound1, bound1)
    Wp_b = jax.random.uniform(k4, (1, H), jnp.float32, -bound1, bound1)
    bound2 = 1.0 / (H ** 0.5)
    vp_w = jax.random.uniform(k5, (H, 1), jnp.float32, -bound2, bound2)
    vp_b = jax.random.uniform(k6, (1, 1), jnp.float32, -bound2, bound2)
    params = (Wp_w, Wp_b, vp_w, vp_b)

    # batch_tile auto-picks 8 -> 2 "parallel" batch steps; seq_tile=8 forces 2 steps on the
    # S-reduction axis so the accumulate/finalize path is exercised.
    attn_w, ctx = local_predictive_attention(0, hidden, encoder_outputs, params, D,
                                             seq_tile=8)
    jax.block_until_ready((attn_w, ctx))

    ref_w, ref_c = reference(hidden, encoder_outputs, Wp_w, Wp_b, vp_w, vp_b, D)
    assert attn_w.shape == (B, 2 * D + 1) and ctx.shape == (B, E)
    assert jnp.allclose(attn_w, ref_w, atol=2e-5, rtol=2e-5), \
        float(jnp.max(jnp.abs(attn_w - ref_w)))
    assert jnp.allclose(ctx, ref_c, atol=2e-5, rtol=2e-5), \
        float(jnp.max(jnp.abs(ctx - ref_c)))
    print("KERNEL_OK")
</pallas_src>

<mosaic_0001>
module attributes {stable_mosaic.version = 11 : i64} {
  func.func @fused_local_attn_kernel(%arg0: i32, %arg1: i32, %arg2: memref<8x32xf32, #tpu.memory_space<vmem>>, %arg3: memref<8x8x32xf32, #tpu.memory_space<vmem>>, %arg4: memref<32x16xf32, #tpu.memory_space<vmem>>, %arg5: memref<1x16xf32, #tpu.memory_space<vmem>>, %arg6: memref<1x16xf32, #tpu.memory_space<vmem>>, %arg7: memref<1x1xf32, #tpu.memory_space<vmem>>, %arg8: memref<8x5xf32, #tpu.memory_space<vmem>>, %arg9: memref<8x32xf32, #tpu.memory_space<vmem>>, %arg10: memref<8x5x32xf32, #tpu.memory_space<vmem>>) attributes {dimension_semantics = [#tpu.dimension_semantics<parallel>, #tpu.dimension_semantics<arbitrary>], iteration_bounds = array<i64: 2, 2>, scalar_prefetch = 0 : i64, scratch_operands = 1 : i64, tpu.core_type = #tpu.core_type<tc>, window_params = [{transform_indices = @transform_0, window_bounds = array<i64: 8, 32>}, {transform_indices = @transform_1, window_bounds = array<i64: 8, 8, 32>}, {pipeline_mode = #tpu.pipeline_mode<synchronous>, transform_indices = @transform_2, window_bounds = array<i64: 32, 16>}, {pipeline_mode = #tpu.pipeline_mode<synchronous>, transform_indices = @transform_3, window_bounds = array<i64: 1, 16>}, {pipeline_mode = #tpu.pipeline_mode<synchronous>, transform_indices = @transform_4, window_bounds = array<i64: 1, 16>}, {pipeline_mode = #tpu.pipeline_mode<synchronous>, transform_indices = @transform_5, window_bounds = array<i64: 1, 1>}, {transform_indices = @transform_6, window_bounds = array<i64: 8, 5>}, {transform_indices = @transform_7, window_bounds = array<i64: 8, 32>}]} {
    %c0_i32 = arith.constant 0 : i32
    %0 = arith.cmpi eq, %arg1, %c0_i32 : i32
    %1 = arith.extui %0 : i1 to i32
    %c0_i32_0 = arith.constant 0 : i32
    %2 = arith.cmpi ne, %1, %c0_i32_0 : i32
    scf.if %2 {
      %cst_27 = arith.constant 0.000000e+00 : f32
      %63 = vector.broadcast %cst_27 : f32 to vector<8x5x32xf32>
      %c0_28 = arith.constant 0 : index
      %c0_29 = arith.constant 0 : index
      %c0_30 = arith.constant 0 : index
      %64 = vector.load %arg10[%c0_28, %c0_29, %c0_30] : memref<8x5x32xf32, #tpu.memory_space<vmem>>, vector<8x5x32xf32>
      tpu.vector_store %arg10[%c0_28, %c0_29, %c0_30], %63 {strides = array<i32>} : memref<8x5x32xf32, #tpu.memory_space<vmem>>, vector<8x5x32xf32>,
    } else {
    }
    %c0 = arith.constant 0 : index
    %c0_1 = arith.constant 0 : index
    %3 = vector.load %arg2[%c0, %c0_1] : memref<8x32xf32, #tpu.memory_space<vmem>>, vector<8x32xf32>
    %c0_2 = arith.constant 0 : index
    %c0_3 = arith.constant 0 : index
    %c0_4 = arith.constant 0 : index
    %4 = vector.load %arg3[%c0_2, %c0_3, %c0_4] : memref<8x8x32xf32, #tpu.memory_space<vmem>>, vector<8x8x32xf32>
    %c0_5 = arith.constant 0 : index
    %c0_6 = arith.constant 0 : index
    %5 = vector.load %arg4[%c0_5, %c0_6] : memref<32x16xf32, #tpu.memory_space<vmem>>, vector<32x16xf32>
    %cst = arith.constant dense<0.000000e+00> : vector<8x16xf32>
    %6 = tpu.matmul %3, %5, %cst {dimension_numbers = #tpu.dot_dimension_numbers<[1], [0], [0], [1], [0, 0, 1, 1], [], []>} : vector<8x32xf32>, vector<32x16xf32>, vector<8x16xf32> -> vector<8x16xf32>
    %c0_7 = arith.constant 0 : index
    %c0_8 = arith.constant 0 : index
    %7 = vector.load %arg5[%c0_7, %c0_8] : memref<1x16xf32, #tpu.memory_space<vmem>>, vector<1x16xf32>
    %8 = vector.broadcast %7 : vector<1x16xf32> to vector<8x16xf32>
    %9 = arith.addf %6, %8 : vector<8x16xf32>
    %10 = math.tanh %9 : vector<8x16xf32>
    %c0_9 = arith.constant 0 : index
    %c0_10 = arith.constant 0 : index
    %11 = vector.load %arg6[%c0_9, %c0_10] : memref<1x16xf32, #tpu.memory_space<vmem>>, vector<1x16xf32>
    %12 = vector.broadcast %11 : vector<1x16xf32> to vector<8x16xf32>
    %13 = arith.mulf %10, %12 : vector<8x16xf32>
    %cst_11 = arith.constant dense<0.000000e+00> : vector<8xf32>
    %14 = vector.multi_reduction <add>, %13, %cst_11 [1] : vector<8x16xf32> to vector<8xf32>
    %15 = vector.shape_cast %14 : vector<8xf32> to vector<8x1xf32>
    %c0_12 = arith.constant 0 : index
    %c0_13 = arith.constant 0 : index
    %16 = vector.load %arg7[%c0_12, %c0_13] : memref<1x1xf32, #tpu.memory_space<vmem>>, vector<1x1xf32>
    %17 = vector.broadcast %16 : vector<1x1xf32> to vector<8x1xf32>
    %18 = arith.addf %15, %17 : vector<8x1xf32>
    %19 = arith.negf %18 : vector<8x1xf32>
    %20 = math.exp %19 : vector<8x1xf32>
    %cst_14 = arith.constant 1.000000e+00 : f32
    %21 = vector.broadcast %cst_14 : f32 to vector<8x1xf32>
    %22 = arith.addf %21, %20 : vector<8x1xf32>
    %23 = arith.divf %21, %22 : vector<8x1xf32>
    %cst_15 = arith.constant 1.600000e+01 : f32
    %24 = vector.broadcast %cst_15 : f32 to vector<8x1xf32>
    %25 = arith.mulf %24, %23 : vector<8x1xf32>
    %26 = math.floor %25 : vector<8x1xf32>
    %27 = arith.subf %25, %26 : vector<8x1xf32>
    %cst_16 = arith.constant 5.000000e-01 : f32
    %28 = vector.broadcast %cst_16 : f32 to vector<8x1xf32>
    %29 = arith.mulf %26, %28 : vector<8x1xf32>
    %30 = math.floor %29 : vector<8x1xf32>
    %31 = arith.cmpf one, %29, %30 : vector<8x1xf32>
    %cst_17 = arith.constant 5.000000e-01 : f32
    %32 = vector.broadcast %cst_17 : f32 to vector<8x1xf32>
    %33 = arith.cmpf ogt, %27, %32 : vector<8x1xf32>
    %cst_18 = arith.constant 5.000000e-01 : f32
    %34 = vector.broadcast %cst_18 : f32 to vector<8x1xf32>
    %35 = arith.cmpf oeq, %27, %34 : vector<8x1xf32>
    %36 = arith.andi %35, %31 : vector<8x1xi1>
    %37 = arith.ori %33, %36 : vector<8x1xi1>
    %38 = arith.extui %37 : vector<8x1xi1> to vector<8x1xi32>
    %39 = arith.sitofp %38 : vector<8x1xi32> to vector<8x1xf32>
    %40 = arith.addf %26, %39 : vector<8x1xf32>
    %41 = tpu.iota {dimensions = array<i32: 1>} : vector<8x5xi32>
    %42 = arith.fptosi %40 : vector<8x1xf32> to vector<8x1xi32>
    %43 = vector.broadcast %42 : vector<8x1xi32> to vector<8x5xi32>
    %44 = arith.addi %41, %43 : vector<8x5xi32>
    %c2_i32 = arith.constant 2 : i32
    %45 = vector.broadcast %c2_i32 : i32 to vector<8x5xi32>
    %46 = arith.subi %44, %45 : vector<8x5xi32>
    %47 = tpu.iota {dimensions = array<i32: 2>} : vector<8x5x8xi32>
    %c8_i32 = arith.constant 8 : i32
    %48 = arith.muli %arg1, %c8_i32 : i32
    %49 = vector.broadcast %48 : i32 to vector<8x5x8xi32>
    %50 = arith.addi %47, %49 : vector<8x5x8xi32>
    %51 = vector.shape_cast %46 : vector<8x5xi32> to vector<8x5x1xi32>
    %52 = vector.broadcast %51 : vector<8x5x1xi32> to vector<8x5x8xi32>
    %53 = arith.cmpi eq, %50, %52 : vector<8x5x8xi32>
    %54 = arith.extui %53 : vector<8x5x8xi1> to vector<8x5x8xi32>
    %55 = arith.sitofp %54 : vector<8x5x8xi32> to vector<8x5x8xf32>
    %c0_19 = arith.constant 0 : index
    %c0_20 = arith.constant 0 : index
    %c0_21 = arith.constant 0 : index
    %56 = vector.load %arg10[%c0_19, %c0_20, %c0_21] : memref<8x5x32xf32, #tpu.memory_space<vmem>>, vector<8x5x32xf32>
    "tpu.trace_start"() <{level = 10 : i32, message = "bws,bse->bwe"}> : () -> ()
    %cst_22 = arith.constant dense<0.000000e+00> : vector<8x5x32xf32>
    %57 = tpu.matmul %55, %4, %cst_22 {dimension_numbers = #tpu.dot_dimension_numbers<[2], [1], [1], [2], [0, 0, 0, 1, 1, 2], [0], [0]>} : vector<8x5x8xf32>, vector<8x8x32xf32>, vector<8x5x32xf32> -> vector<8x5x32xf32>
    "tpu.trace_stop"() : () -> ()
    %58 = arith.addf %56, %57 : vector<8x5x32xf32>
    %c0_23 = arith.constant 0 : index
    %c0_24 = arith.constant 0 : index
    %c0_25 = arith.constant 0 : index
    %59 = vector.load %arg10[%c0_23, %c0_24, %c0_25] : memref<8x5x32xf32, #tpu.memory_space<vmem>>, vector<8x5x32xf32>
    tpu.vector_store %arg10[%c0_23, %c0_24, %c0_25], %58 {strides = array<i32>} : memref<8x5x32xf32, #tpu.memory_space<vmem>>, vector<8x5x32xf32>,
    %c1_i32 = arith.constant 1 : i32
    %60 = arith.cmpi eq, %arg1, %c1_i32 : i32
    %61 = arith.extui %60 : i1 to i32
    %c0_i32_26 = arith.constant 0 : i32
    %62 = arith.cmpi ne, %61, %c0_i32_26 : i32
    scf.if %62 {
      %c0_27 = arith.constant 0 : index
      %c0_28 = arith.constant 0 : index
      %c0_29 = arith.constant 0 : index
      %63 = vector.load %arg10[%c0_27, %c0_28, %c0_29] : memref<8x5x32xf32, #tpu.memory_space<vmem>>, vector<8x5x32xf32>
      %64 = vector.shape_cast %3 : vector<8x32xf32> to vector<8x1x32xf32>
      %65 = vector.broadcast %64 : vector<8x1x32xf32> to vector<8x5x32xf32>
      %66 = arith.mulf %63, %65 : vector<8x5x32xf32>
      %cst_30 = arith.constant dense<0.000000e+00> : vector<8x5xf32>
      %67 = vector.multi_reduction <add>, %66, %cst_30 [2] : vector<8x5x32xf32> to vector<8x5xf32>
      %cst_31 = arith.constant dense<0xFF800000> : vector<8xf32>
      %68 = vector.multi_reduction <maximumf>, %67, %cst_31 [1] : vector<8x5xf32> to vector<8xf32>
      %69 = vector.shape_cast %68 : vector<8xf32> to vector<8x1xf32>
      %70 = vector.broadcast %69 : vector<8x1xf32> to vector<8x5xf32>
      %71 = arith.subf %67, %70 : vector<8x5xf32>
      %72 = math.exp %71 : vector<8x5xf32>
      %cst_32 = arith.constant dense<0.000000e+00> : vector<8xf32>
      %73 = vector.multi_reduction <add>, %72, %cst_32 [1] : vector<8x5xf32> to vector<8xf32>
      %74 = vector.shape_cast %73 : vector<8xf32> to vector<8x1xf32>
      %75 = vector.broadcast %74 : vector<8x1xf32> to vector<8x5xf32>
      %76 = arith.divf %72, %75 : vector<8x5xf32>
      %77 = arith.sitofp %46 : vector<8x5xi32> to vector<8x5xf32>
      %78 = vector.broadcast %25 : vector<8x1xf32> to vector<8x5xf32>
      %79 = arith.subf %77, %78 : vector<8x5xf32>
      %80 = arith.mulf %79, %79 : vector<8x5xf32>
      %cst_33 = arith.constant -5.000000e-01 : f32
      %81 = vector.broadcast %cst_33 : f32 to vector<8x5xf32>
      %82 = arith.mulf %81, %80 : vector<8x5xf32>
      %83 = math.exp %82 : vector<8x5xf32>
      %84 = arith.mulf %76, %83 : vector<8x5xf32>
      %85 = vector.shape_cast %84 : vector<8x5xf32> to vector<8x5x1xf32>
      %86 = vector.broadcast %85 : vector<8x5x1xf32> to vector<8x5x32xf32>
      %87 = arith.mulf %86, %63 : vector<8x5x32xf32>
      %cst_34 = arith.constant dense<0.000000e+00> : vector<8x32xf32>
      %88 = vector.multi_reduction <add>, %87, %cst_34 [1] : vector<8x5x32xf32> to vector<8x32xf32>
      %c0_35 = arith.constant 0 : index
      %c0_36 = arith.constant 0 : index
      %89 = vector.load %arg8[%c0_35, %c0_36] : memref<8x5xf32, #tpu.memory_space<vmem>>, vector<8x5xf32>
      tpu.vector_store %arg8[%c0_35, %c0_36], %84 {strides = array<i32>} : memref<8x5xf32, #tpu.memory_space<vmem>>, vector<8x5xf32>,
      %c0_37 = arith.constant 0 : index
      %c0_38 = arith.constant 0 : index
      %90 = vector.load %arg9[%c0_37, %c0_38] : memref<8x32xf32, #tpu.memory_space<vmem>>, vector<8x32xf32>
      tpu.vector_store %arg9[%c0_37, %c0_38], %88 {strides = array<i32>} : memref<8x32xf32, #tpu.memory_space<vmem>>, vector<8x32xf32>,
    } else {
    }
    return
  }
  func.func @transform_0(%arg0: i32, %arg1: i32) -> (i32, i32) {
    %c0_i32 = arith.constant 0 : i32
    %c0_i32_0 = arith.constant 0 : i32
    return %arg0, %c0_i32 : i32, i32
  }
  func.func @transform_1(%arg0: i32, %arg1: i32) -> (i32, i32, i32) {
    %c0_i32 = arith.constant 0 : i32
    %c0_i32_0 = arith.constant 0 : i32
    return %arg0, %arg1, %c0_i32 : i32, i32, i32
  }
  func.func @transform_2(%arg0: i32, %arg1: i32) -> (i32, i32) {
    %c0_i32 = arith.constant 0 : i32
    %c0_i32_0 = arith.constant 0 : i32
    %c0_i32_1 = arith.constant 0 : i32
    return %c0_i32, %c0_i32_0 : i32, i32
  }
  func.func @transform_3(%arg0: i32, %arg1: i32) -> (i32, i32) {
    %c0_i32 = arith.constant 0 : i32
    %c0_i32_0 = arith.constant 0 : i32
    %c0_i32_1 = arith.constant 0 : i32
    return %c0_i32, %c0_i32_0 : i32, i32
  }
  func.func @transform_4(%arg0: i32, %arg1: i32) -> (i32, i32) {
    %c0_i32 = arith.constant 0 : i32
    %c0_i32_0 = arith.constant 0 : i32
    %c0_i32_1 = arith.constant 0 : i32
    return %c0_i32, %c0_i32_0 : i32, i32
  }
  func.func @transform_5(%arg0: i32, %arg1: i32) -> (i32, i32) {
    %c0_i32 = arith.constant 0 : i32
    %c0_i32_0 = arith.constant 0 : i32
    %c0_i32_1 = arith.constant 0 : i32
    return %c0_i32, %c0_i32_0 : i32, i32
  }
  func.func @transform_6(%arg0: i32, %arg1: i32) -> (i32, i32) {
    %c0_i32 = arith.constant 0 : i32
    %c0_i32_0 = arith.constant 0 : i32
    return %arg0, %c0_i32 : i32, i32
  }
  func.func @transform_7(%arg0: i32, %arg1: i32) -> (i32, i32) {
    %c0_i32 = arith.constant 0 : i32
    %c0_i32_0 = arith.constant 0 : i32
    return %arg0, %c0_i32 : i32, i32
  }
}

</mosaic_0001>

<llo_original>
// kernel: tpu_custom_call.1
$region0: #{tpu_custom_call.1}
  #allocation0 [shape = 'u32[]', space=smem, size = 0x4, offset = 0x4, fixed_abs, tag = 'smem constant byte address 0x4 - core index']
  #allocation1 [shape = 'u32[72,128]{1,0:T(1,128)}', space=vmem, size = 0x9000, scoped, tag = 'internal scratch']
  #allocation2 [shape = 'f32[8,5,32]{2,1,0:T(8,128)}', space=vmem, size = 0x8000, scoped, tag = 'scratch operand']
  #allocation3 [shape = 'f32[1,1]{1,0:T(1,128)S(1)}', space=vmem, size = 0x200, scoped, tag = 'scoped memory for tpu_custom_call.1']
  %s0 = inlined_call_operand.vmem [shape: f32[16,32], index: 0, kind: input, shape index: {}]
  %s1 = inlined_call_operand.hbm [shape: f32[16,16,32], index: 1, kind: input, shape index: {}]
  %s2 = inlined_call_operand.vmem [shape: f32[32,16], index: 2, kind: input, shape index: {}]
  %s3 = inlined_call_operand.vmem [shape: f32[1,16], index: 3, kind: input, shape index: {}]
  %s4 = inlined_call_operand.vmem [shape: f32[1,16], index: 4, kind: input, shape index: {}]
  %s5 = inlined_call_operand.<no memory space> [shape: f32[1,1], index: 5, kind: input, shape index: {}]
  %s6 = inlined_call_operand.vmem [shape: f32[16,5], index: 6, kind: output, shape index: {0}]
  %s7 = inlined_call_operand.hbm [shape: f32[16,32], index: 7, kind: output, shape index: {1}]
  %8 = xla_tuple %s6, %s7
  %s9 = sld [smem:[#allocation0]]
  $region77: #{tpu_custom_call.1} parent=0
    _
  %s11 = ssub.s32 1, %s9
  %s12 = scalar_select 0, %s11, %s9
  %v13 = vstv %s5
  %14 = vst [vmem:[#allocation3] sm:$0x1] %v13
  $region1: #{tpu_custom_call.1} parent=0
    #allocation4 [shape = 'u8[65536]{0}', space=vmem, size = 0x10000, scoped, tag = 'input window, operand 1']
    #allocation5 [shape = 's32[2]{0}', space=sflag, size = 0x8, scoped, tag = 'scoped memory for tpu_custom_call.1']
    #allocation6 [shape = 's32[2]{0}', space=sflag, size = 0x8, scoped, tag = 'scoped memory for tpu_custom_call.1']
    #allocation7 [shape = 'u8[8192]{0}', space=vmem, size = 0x2000, scoped, tag = 'output window, operand 1']
    %15 = vsyncpa [#allocation5], 0
    %s16 = scalar_lea.sflag [#allocation5], 1
    %17 = vsyncpa %s16, 0
    %18 = vsyncpa [#allocation6], 0
    %s19 = scalar_lea.sflag [#allocation6], 1
    %20 = vsyncpa %s19, 0
    loop: start=0, step=1, limit=6
    $region2: #{tpu_custom_call.1} parent=1 // loop_pre_header
      _
    $region3: #{tpu_custom_call.1} parent=1 // loop_header
      %s22 = sphi 0, %s26
      %p23 = scmp.ge.s32.totalorder %s22, 6
      %s29 = sphi 0, %s41
      %s30 = sphi 0, %s37
      %s31 = sphi 0, %s29
      %s32 = sphi 0, %s30
      %s33 = sphi 0, %s31
      %s34 = sphi 0, %s32
      %s44 = sphi 0, %s46
      %s47 = sphi 0, %s44
      %s48 = sphi 0, %s47
      %s64 = sphi 0, %s48
      %s72 = sphi 0, %s74
      %s75 = sphi 0, %s72
      %s76 = sphi 0, %s75
      %s92 = sphi 0, %s76
      %s96 = sphi 0, %s96
      %s98 = sphi 0, %s96
      %s99 = sphi 0, %s98
      %s113 = sphi 0, %s99
      %s117 = sphi 0, %s117
      %s119 = sphi 0, %s117
      %s120 = sphi 0, %s119
      %s134 = sphi 0, %s120
      %s138 = sphi 0, %s138
      %s140 = sphi 0, %s138
      %s141 = sphi 0, %s140
      %s155 = sphi 0, %s141
      %s159 = sphi 0, %s159
      %s161 = sphi 0, %s159
      %s162 = sphi 0, %s161
      %s176 = sphi 0, %s162
      %s182 = sphi 0, %s184
      %s185 = sphi 0, %s182
      %s186 = sphi 0, %s185
      %s202 = sphi 0, %s186
      %s208 = sphi 0, %s210
      %s211 = sphi 0, %s208
      %s212 = sphi 0, %s211
      %s228 = sphi 0, %s212
    $region4: #{tpu_custom_call.1} parent=1 // loop_header_branch
      %25 = sbr.rel (%p23) target = $region8
    $region5: #{tpu_custom_call.1} parent=1 // loop_body
      %s27 = ssub.s32 %s22, 1
      %s28 = ssub.s32 %s22, 2
      %s35 = sadd.s32 1, %s30
      %p36 = scmp.ge.s32.totalorder %s35, 2
      %s37 = scalar_select %p36, 0, %s35
      %s38 = sadd.s32 1, %s29
      %s39 = scalar_select %p36, %s38, %s29
      %p40 = scmp.ge.s32.totalorder %s39, 2
      %s41 = scalar_select %p40, 0, %s39
      %s42 = ssub.s32 %s29, %s41
      %p43 = scmp.eq.s32.totalorder %s42, 0
      %s45 = sadd.s32 %s44, 1
      %s46 = scalar_select %p43, %s44, %s45
      %p49 = pneg %p43
      %p50 = scmp.eq.s32.totalorder %s22, 3
      %p51 = por %p49, %p50
      %p52 = scmp.ne.s32.totalorder %s44, %s47
      %p53 = scmp.eq.s32.totalorder %s22, 0
      %p54 = por %p52, %p53
      %p55 = scmp.ne.s32.totalorder %s44, %s47
      %p56 = scmp.eq.s32.totalorder %s27, 3
      %p57 = por %p55, %p56
      %p58 = scmp.ne.s32.totalorder %s47, %s48
      %p59 = scmp.eq.s32.totalorder %s27, 0
      %p60 = por %p58, %p59
      %p61 = scmp.ne.s32.totalorder %s47, %s48
      %p62 = scmp.eq.s32.totalorder %s28, 3
      %p63 = por %p61, %p62
      %p65 = scmp.ne.s32.totalorder %s48, %s64
      %p66 = scmp.eq.s32.totalorder %s28, 0
      %p67 = por %p65, %p66
      %s68 = ssub.s32 %s29, %s41
      %s69 = ssub.s32 %s30, %s37
      %s70 = sor.u32 %s68, %s69
      %p71 = scmp.eq.s32.totalorder %s70, 0
      %s73 = sadd.s32 %s72, 1
      %s74 = scalar_select %p71, %s72, %s73
      %p77 = pneg %p71
      %p78 = scmp.eq.s32.totalorder %s22, 3
      %p79 = por %p77, %p78
      %p80 = scmp.ne.s32.totalorder %s72, %s75
      %p81 = scmp.eq.s32.totalorder %s22, 0
      %p82 = por %p80, %p81
      %p83 = scmp.ne.s32.totalorder %s72, %s75
      %p84 = scmp.eq.s32.totalorder %s27, 3
      %p85 = por %p83, %p84
      %p86 = scmp.ne.s32.totalorder %s75, %s76
      %p87 = scmp.eq.s32.totalorder %s27, 0
      %p88 = por %p86, %p87
      %p89 = scmp.ne.s32.totalorder %s75, %s76
      %p90 = scmp.eq.s32.totalorder %s28, 3
      %p91 = por %p89, %p90
      %p93 = scmp.ne.s32.totalorder %s76, %s92
      %p94 = scmp.eq.s32.totalorder %s28, 0
      %p95 = por %p93, %p94
      %s97 = sadd.s32 %s96, 1
      %p100 = scmp.eq.s32.totalorder %s22, 3
      %p101 = scmp.ne.s32.totalorder %s96, %s98
      %p102 = scmp.eq.s32.totalorder %s22, 0
      %p103 = por %p101, %p102
      %p104 = scmp.ne.s32.totalorder %s96, %s98
      %p105 = scmp.eq.s32.totalorder %s27, 3
      %p106 = por %p104, %p105
      %p107 = scmp.ne.s32.totalorder %s98, %s99
      %p108 = scmp.eq.s32.totalorder %s27, 0
      %p109 = por %p107, %p108
      %p110 = scmp.ne.s32.totalorder %s98, %s99
      %p111 = scmp.eq.s32.totalorder %s28, 3
      %p112 = por %p110, %p111
      %p114 = scmp.ne.s32.totalorder %s99, %s113
      %p115 = scmp.eq.s32.totalorder %s28, 0
      %p116 = por %p114, %p115
      %s118 = sadd.s32 %s117, 1
      %p121 = scmp.eq.s32.totalorder %s22, 3
      %p122 = scmp.ne.s32.totalorder %s117, %s119
      %p123 = scmp.eq.s32.totalorder %s22, 0
      %p124 = por %p122, %p123
      %p125 = scmp.ne.s32.totalorder %s117, %s119
      %p126 = scmp.eq.s32.totalorder %s27, 3
      %p127 = por %p125, %p126
      %p128 = scmp.ne.s32.totalorder %s119, %s120
      %p129 = scmp.eq.s32.totalorder %s27, 0
      %p130 = por %p128, %p129
      %p131 = scmp.ne.s32.totalorder %s119, %s120
      %p132 = scmp.eq.s32.totalorder %s28, 3
      %p133 = por %p131, %p132
      %p135 = scmp.ne.s32.totalorder %s120, %s134
      %p136 = scmp.eq.s32.totalorder %s28, 0
      %p137 = por %p135, %p136
      %s139 = sadd.s32 %s138, 1
      %p142 = scmp.eq.s32.totalorder %s22, 3
      %p143 = scmp.ne.s32.totalorder %s138, %s140
      %p144 = scmp.eq.s32.totalorder %s22, 0
      %p145 = por %p143, %p144
      %p146 = scmp.ne.s32.totalorder %s138, %s140
      %p147 = scmp.eq.s32.totalorder %s27, 3
      %p148 = por %p146, %p147
      %p149 = scmp.ne.s32.totalorder %s140, %s141
      %p150 = scmp.eq.s32.totalorder %s27, 0
      %p151 = por %p149, %p150
      %p152 = scmp.ne.s32.totalorder %s140, %s141
      %p153 = scmp.eq.s32.totalorder %s28, 3
      %p154 = por %p152, %p153
      %p156 = scmp.ne.s32.totalorder %s141, %s155
      %p157 = scmp.eq.s32.totalorder %s28, 0
      %p158 = por %p156, %p157
      %s160 = sadd.s32 %s159, 1
      %p163 = scmp.eq.s32.totalorder %s22, 3
      %p164 = scmp.ne.s32.totalorder %s159, %s161
      %p165 = scmp.eq.s32.totalorder %s22, 0
      %p166 = por %p164, %p165
      %p167 = scmp.ne.s32.totalorder %s159, %s161
      %p168 = scmp.eq.s32.totalorder %s27, 3
      %p169 = por %p167, %p168
      %p170 = scmp.ne.s32.totalorder %s161, %s162
      %p171 = scmp.eq.s32.totalorder %s27, 0
      %p172 = por %p170, %p171
      %p173 = scmp.ne.s32.totalorder %s161, %s162
      %p174 = scmp.eq.s32.totalorder %s28, 3
      %p175 = por %p173, %p174
      %p177 = scmp.ne.s32.totalorder %s162, %s176
      %p178 = scmp.eq.s32.totalorder %s28, 0
      %p179 = por %p177, %p178
      %s180 = ssub.s32 %s29, %s41
      %p181 = scmp.eq.s32.totalorder %s180, 0
      %s183 = sadd.s32 %s182, 1
      %s184 = scalar_select %p181, %s182, %s183
      %p187 = pneg %p181
      %p188 = scmp.eq.s32.totalorder %s22, 3
      %p189 = por %p187, %p188
      %p190 = scmp.ne.s32.totalorder %s182, %s185
      %p191 = scmp.eq.s32.totalorder %s22, 0
      %p192 = por %p190, %p191
      %p193 = scmp.ne.s32.totalorder %s182, %s185
      %p194 = scmp.eq.s32.totalorder %s27, 3
      %p195 = por %p193, %p194
      %p196 = scmp.ne.s32.totalorder %s185, %s186
      %p197 = scmp.eq.s32.totalorder %s27, 0
      %p198 = por %p196, %p197
      %p199 = scmp.ne.s32.totalorder %s185, %s186
      %p200 = scmp.eq.s32.totalorder %s28, 3
      %p201 = por %p199, %p200
      %p203 = scmp.ne.s32.totalorder %s186, %s202
      %p204 = scmp.eq.s32.totalorder %s28, 0
      %p205 = por %p203, %p204
      %s206 = ssub.s32 %s29, %s41
      %p207 = scmp.eq.s32.totalorder %s206, 0
      %s209 = sadd.s32 %s208, 1
      %s210 = scalar_select %p207, %s208, %s209
      %p213 = pneg %p207
      %p214 = scmp.eq.s32.totalorder %s22, 3
      %p215 = por %p213, %p214
      %p216 = scmp.ne.s32.totalorder %s208, %s211
      %p217 = scmp.eq.s32.totalorder %s22, 0
      %p218 = por %p216, %p217
      %p219 = scmp.ne.s32.totalorder %s208, %s211
      %p220 = scmp.eq.s32.totalorder %s27, 3
      %p221 = por %p219, %p220
      %p222 = scmp.ne.s32.totalorder %s211, %s212
      %p223 = scmp.eq.s32.totalorder %s27, 0
      %p224 = por %p222, %p223
      %p225 = scmp.ne.s32.totalorder %s211, %s212
      %p226 = scmp.eq.s32.totalorder %s28, 3
      %p227 = por %p225, %p226
      %p229 = scmp.ne.s32.totalorder %s212, %s228
      %p230 = scmp.eq.s32.totalorder %s28, 0
      %p231 = por %p229, %p230
      %p232 = scmp.le.s32.totalorder 1, %s22
      %p233 = scmp.lt.s32.totalorder %s22, 5
      %p234 = pnand %p232, %p233
      %p235 = pneg %p234
      // Predicated region
      $region9: #{tpu_custom_call.1} parent=5 // pred_check
        _
      $region10: #{tpu_custom_call.1} parent=5 // pred_check_branch
        %237 = sbr.rel (%p234) target = $region12
      $region11: #{tpu_custom_call.1} parent=5 // pred_region
        %s238 = ssub.s32 %s22, 1
        // Predicated region
        $region13: #{tpu_custom_call.1} parent=11 // pred_check
          %p239 = pneg %p109
        $region14: #{tpu_custom_call.1} parent=11 // pred_check_branch
          %241 = sbr.rel (%p239) target = $region16
        $region15: #{tpu_custom_call.1} parent=11 // pred_region
          _
        $region16: #{tpu_custom_call.1} parent=11 // pred_fallthru
          _
        // Predicated region
        $region17: #{tpu_custom_call.1} parent=11 // pred_check
          %p242 = pneg %p130
        $region18: #{tpu_custom_call.1} parent=11 // pred_check_branch
          %244 = sbr.rel (%p242) target = $region20
        $region19: #{tpu_custom_call.1} parent=11 // pred_region
          _
        $region20: #{tpu_custom_call.1} parent=11 // pred_fallthru
          _
        // Predicated region
        $region21: #{tpu_custom_call.1} parent=11 // pred_check
          %p245 = pneg %p151
        $region22: #{tpu_custom_call.1} parent=11 // pred_check_branch
          %247 = sbr.rel (%p245) target = $region24
        $region23: #{tpu_custom_call.1} parent=11 // pred_region
          _
        $region24: #{tpu_custom_call.1} parent=11 // pred_fallthru
          _
        // Predicated region
        $region25: #{tpu_custom_call.1} parent=11 // pred_check
          %p248 = pneg %p172
        $region26: #{tpu_custom_call.1} parent=11 // pred_check_branch
          %250 = sbr.rel (%p248) target = $region28
        $region27: #{tpu_custom_call.1} parent=11 // pred_region
          _
        $region28: #{tpu_custom_call.1} parent=11 // pred_fallthru
          _
      $region12: #{tpu_custom_call.1} parent=5 // pred_fallthru
        _
      %p251 = scmp.lt.s32.totalorder %s22, 4
      // Predicated region
      $region29: #{tpu_custom_call.1} parent=5 // pred_check
        %p252 = pneg %p251
      $region30: #{tpu_custom_call.1} parent=5 // pred_check_branch
        %254 = sbr.rel (%p252) target = $region32
      $region31: #{tpu_custom_call.1} parent=5 // pred_region
        // Predicated region
        $region33: #{tpu_custom_call.1} parent=31 // pred_check
          %p255 = pneg %p54
        $region34: #{tpu_custom_call.1} parent=31 // pred_check_branch
          %257 = sbr.rel (%p255) target = $region36
        $region35: #{tpu_custom_call.1} parent=31 // pred_region
          %p258 = scmp.lt.s32.totalorder %s29, 1
          %s259 = scalar_select %p258, %s29, 1
          %s260 = smul.addr %s259, 8
          %s261 = scalar_lea.vmem %s0, %s260
        $region36: #{tpu_custom_call.1} parent=31 // pred_fallthru
          _
        // Predicated region
        $region37: #{tpu_custom_call.1} parent=31 // pred_check
          %p262 = pneg %p82
        $region38: #{tpu_custom_call.1} parent=31 // pred_check_branch
          %264 = sbr.rel (%p262) target = $region40
        $region39: #{tpu_custom_call.1} parent=31 // pred_region
          %s265 = sand.u32 %s72, 1
          %s266 = scalar_lea.sflag [#allocation5], %s265
          %s267 = sand.u32 %s72, 1
          %s268 = smul.addr %s267, 64
          %s269 = scalar_lea.vmem [#allocation4], %s268
          %s270 = smul.u32 8, %s29
          %272 = vsyncadd %s266, 0
          %s273 = smul.addr %s270, 2
          %s274 = sadd.s32 %s30, %s273
          %s275 = smul.addr %s274, 8
          %s276 = scalar_lea.hbm %s1, %s275
          %s277 = sshll.u32 %s276, 4
          %s278 = int_to_ptr.hbm [resolvable:$true] %s277
          %s279 = sshll.u32 %s269, 4
          %s280 = int_to_ptr.vmem [resolvable:$true] %s279
          %285 = dma.hbm_to_vmem [thread:$0]  %s278, 1024, %s280, %s266, 256, 128, 8
        $region40: #{tpu_custom_call.1} parent=31 // pred_fallthru
          _
      $region32: #{tpu_custom_call.1} parent=5 // pred_fallthru
        _
      %p286 = scmp.le.s32.totalorder 1, %s22
      %p287 = scmp.lt.s32.totalorder %s22, 5
      %p288 = pnand %p286, %p287
      %p289 = pneg %p288
      // Predicated region
      $region41: #{tpu_custom_call.1} parent=5 // pred_check
        _
      $region42: #{tpu_custom_call.1} parent=5 // pred_check_branch
        %291 = sbr.rel (%p288) target = $region44
      $region43: #{tpu_custom_call.1} parent=5 // pred_region
        %s292 = ssub.s32 %s22, 1
        %s293 = sand.u32 %s75, 1
        %s294 = scalar_lea.sflag [#allocation5], %s293
        %s295 = sand.u32 %s75, 1
        %s296 = smul.addr %s295, 64
        %s297 = scalar_lea.vmem [#allocation4], %s296
        // Predicated region
        $region45: #{tpu_custom_call.1} parent=43 // pred_check
          %p298 = pneg %p88
        $region46: #{tpu_custom_call.1} parent=43 // pred_check_branch
          %300 = sbr.rel (%p298) target = $region48
        $region47: #{tpu_custom_call.1} parent=43 // pred_region
          %302 = dma.done %s294, 1024
        $region48: #{tpu_custom_call.1} parent=43 // pred_fallthru
          _
        %p303 = scmp.lt.s32.totalorder %s31, 1
        %s304 = scalar_select %p303, %s31, 1
        %s305 = smul.addr %s304, 8
        %s306 = scalar_lea.vmem %s0, %s305
        %p307 = pneg %p60
        %p308 = pneg %p57
        %s309 = sand.u32 %s75, 1
        %s310 = scalar_lea.sflag [#allocation5], %s309
        %s311 = sand.u32 %s75, 1
        %s312 = smul.addr %s311, 64
        %s313 = scalar_lea.vmem [#allocation4], %s312
        %p314 = pneg %p88
        %p315 = pneg %p85
        %p316 = pneg %p109
        %p317 = pneg %p106
        %p318 = pneg %p130
        %p319 = pneg %p127
        %p320 = pneg %p151
        %p321 = pneg %p148
        %p322 = pneg %p172
        %p323 = pneg %p169
        %p324 = pneg %p198
        %p325 = pneg %p195
        %p326 = scmp.lt.s32.totalorder %s31, 1
        %s327 = scalar_select %p326, %s31, 1
        %s328 = smul.addr %s327, 8
        %s329 = scalar_lea.vmem %s6, %s328
        %p330 = pneg %p224
        %p331 = pneg %p221
        %s332 = sand.u32 %s211, 1
        %s333 = scalar_lea.sflag [#allocation6], %s332
        %s334 = sand.u32 %s211, 1
        %s335 = smul.addr %s334, 8
        %s336 = scalar_lea.vmem [#allocation7], %s335
        %p337 = scmp.lt.s32.totalorder %s31, 1
        %s338 = scalar_select %p337, %s31, 1
        %s339 = smul.addr %s338, 8
        %s340 = scalar_lea.vmem %s0, %s339
        %s341 = smul.u32 8, %s31
        %p342 = scmp.lt.s32.totalorder %s31, 1
        %s343 = scalar_select %p342, %s31, 1
        %s344 = smul.addr %s343, 8
        %s345 = scalar_lea.vmem %s6, %s344
        %p346 = scmp.eq.s32.totalorder %s32, 0
        // Predicated region
        $region49: #{tpu_custom_call.1} parent=43 // pred_check
          %p347 = pneg %p346
        $region50: #{tpu_custom_call.1} parent=43 // pred_check_branch
          %349 = sbr.rel (%p347) target = $region52
        $region51: #{tpu_custom_call.1} parent=43 // pred_region
          %vm350 = vcmask 258048
          %351 = vst.msk [vmem:[#allocation2] sm:$0x1f] %vm350, 0.0
          %352 = vst.msk [vmem:[#allocation2 + $0x8] sm:$0x1f] %vm350, 0.0
          %353 = vst.msk [vmem:[#allocation2 + $0x10] sm:$0x1f] %vm350, 0.0
          %354 = vst.msk [vmem:[#allocation2 + $0x18] sm:$0x1f] %vm350, 0.0
          %355 = vst.msk [vmem:[#allocation2 + $0x20] sm:$0x1f] %vm350, 0.0
          %356 = vst.msk [vmem:[#allocation2 + $0x28] sm:$0x1f] %vm350, 0.0
          %357 = vst.msk [vmem:[#allocation2 + $0x30] sm:$0x1f] %vm350, 0.0
          %358 = vst.msk [vmem:[#allocation2 + $0x38] sm:$0x1f] %vm350, 0.0
        $region52: #{tpu_custom_call.1} parent=43 // pred_fallthru
          _
        %v359 = vld [vmem:[%s340] sm:$0xff]
        %v360 = vld [vmem:[%s297] sm:$0xff]
        %v361 = vld [vmem:[%s297 + $0x8] sm:$0xff]
        %v362 = vld [vmem:[%s297 + $0x10] sm:$0xff]
        %v363 = vld [vmem:[%s297 + $0x18] sm:$0xff]
        %v364 = vld [vmem:[%s297 + $0x20] sm:$0xff]
        %v365 = vld [vmem:[%s297 + $0x28] sm:$0xff]
        %v366 = vld [vmem:[%s297 + $0x30] sm:$0xff]
        %v367 = vld [vmem:[%s297 + $0x38] sm:$0xff]
        %v368 = vld [vmem:[%s2] sm:$0xff]
        %v369 = vld [vmem:[%s2 + $0x8] sm:$0xff]
        %v370 = vld [vmem:[%s2 + $0x10] sm:$0xff]
        %v371 = vld [vmem:[%s2 + $0x18] sm:$0xff]
        %v372 = vld [vmem:[%s3] sm:$0x1]
        %v374 = vperm.slane %v372, 0
        %vm376 = vcmask 261120
        %v378 = vsel %vm376, %v359, 0
        %380 = vmatpush.msra.mxu0 0.0
        %381 = vmatpush.msra.mxu0 0.0
        %382 = vmatpush.msra.mxu0 0.0
        %383 = vmatpush.msra.mxu0 0.0
        %384 = vmatpush.msra.mxu0 0.0
        %385 = vmatpush.msra.mxu0 0.0
        %386 = vmatpush.msra.mxu0 0.0
        %387 = vmatpush.msra.mxu0 0.0
        %388 = vmatpush.msra.mxu0 0.0
        %389 = vmatpush.msra.mxu0 0.0
        %390 = vmatpush.msra.mxu0 0.0
        %391 = vmatpush.msra.mxu0 0.0
        %392 = vmatpush.msra.mxu0 %v371
        %393 = vmatpush.msra.mxu0 %v370
        %394 = vmatpush.msra.mxu0 %v369
        %395 = vmatpush.msra.mxu0 %v368
        %396 = vmatmul.f32.gmra.mxu0 %v378
        %v397 = vpop.f32.mrf.mxu0
        %v398 = vadd.f32 %v374, %v397
        %399 = vdwg.mxu0
        %v400 = vtanh.pop %v398
        %v401 = vld [vmem:[%s4] sm:$0x1]
        %v403 = vperm.slane %v401, 0
        %v405 = vmul.f32 %v400, %v403
        %vm406 = vcmask 130048
        %v407 = vsel %vm406, %v405, 0.0
        %408 = vadd.xlane.f32.xlu0 %v407
        %v409 = vpop.xlane.xlu0 %408
        %v410 = vld [vmem:[#allocation3] sm:$0x1]
        %v412 = vperm.slane %v410, 0
        %v414 = vadd.f32 %v409, %v412
        %v415 = vxor.u32 %v414, 2147483648
        %v416 = vmul.f32 %v415, 1.442695
        %v417 = vpow.pop %v416
        %v418 = vadd.f32 %v417, 1.0
        %v419 = vrcp.pop %v418
        %v420 = vmul.f32 %v418, %v419
        %v421 = vsub.f32 1.0, %v420
        %v422 = vmul.f32 %v419, %v421
        %v423 = vadd.f32 %v419, %v422
        %vm424 = vweird.f32 %v418
        %vm425 = vweird.f32 %v419
        %vm426 = vmor %vm424, %vm425
        %v427 = vsel %vm426, %v419, %v423
        %v428 = vand.u32 2147483647, %v418
        %vm429 = vcmp.eq.f32.partialorder %v428, 8.507059e+37
        %v430 = vand.u32 %v418, 2147483648
        %v431 = vor.u32 1.1754944e-38, %v430
        %v432 = vsel %vm429, %v431, %v427
        %v433 = vmul.f32 1.0, %v432
        %v434 = vmul.f32 %v433, 16.0
        %v435 = vfloor.f32 %v434
        %v436 = vsub.f32 %v434, %v435
        %v437 = vmul.f32 %v435, 0.5
        %v438 = vfloor.f32 %v437
        %vm439 = vcmp.ne.f32.partialorder %v437, %v438
        %vm440 = vcmp.gt.f32.partialorder %v436, 0.5
        %vm441 = vcmp.eq.f32.partialorder %v436, 0.5
        %vm442 = vmand %vm441, %vm439
        %vm443 = vmor %vm440, %vm442
        %v444 = vsel %vm443, 1, 0
        %v445 = vcvt.s32.f32 %v444
        %v446 = vadd.f32 %v435, %v445
        %v447 = vlaneseq
        %v448 = vand.u32 %v447, 127
        %v449 = vcvt.f32.s32.to.zero.pseudo %v446
        %450 = vset.pattern.permute.xlu0 0
        %451 = vperm.xlu0 %450, %v449
        %v452 = vpop.permute.xlu0 %451
        %v453 = vadd.s32 %v448, %v452
        %v454 = vsub.s32 %v453, 2
        %s455 = smul.u32 %s32, 8
        %v456 = vstv %s455
        %v457 = vadd.s32 %v448, %v456
        %v458 = vperm.slane %v454, 0
        %v459 = vlaneseq
        %v460 = vshrl.u32 %v459, 7
        %462 = vset.pattern.permute.xlu0 %v460
        %463 = vperm.xlu0 %462, %v458
        %v464 = vpop.permute.xlu0 %463
        %v465 = vperm.slane %v454, 1
        %v466 = vlaneseq
        %v467 = vshrl.u32 %v466, 7
        %469 = vset.pattern.permute.xlu0 %v467
        %470 = vperm.xlu0 %469, %v465
        %v471 = vpop.permute.xlu0 %470
        %v472 = vperm.slane %v454, 2
        %v473 = vlaneseq
        %v474 = vshrl.u32 %v473, 7
        %476 = vset.pattern.permute.xlu0 %v474
        %477 = vperm.xlu0 %476, %v472
        %v478 = vpop.permute.xlu0 %477
        %v479 = vperm.slane %v454, 3
        %v480 = vlaneseq
        %v481 = vshrl.u32 %v480, 7
        %483 = vset.pattern.permute.xlu0 %v481
        %484 = vperm.xlu0 %483, %v479
        %v485 = vpop.permute.xlu0 %484
        %v486 = vperm.slane %v454, 4
        %v487 = vlaneseq
        %v488 = vshrl.u32 %v487, 7
        %490 = vset.pattern.permute.xlu0 %v488
        %491 = vperm.xlu0 %490, %v486
        %v492 = vpop.permute.xlu0 %491
        %v493 = vperm.slane %v454, 5
        %v494 = vlaneseq
        %v495 = vshrl.u32 %v494, 7
        %497 = vset.pattern.permute.xlu0 %v495
        %498 = vperm.xlu0 %497, %v493
        %v499 = vpop.permute.xlu0 %498
        %v500 = vperm.slane %v454, 6
        %v501 = vlaneseq
        %v502 = vshrl.u32 %v501, 7
        %504 = vset.pattern.permute.xlu0 %v502
        %505 = vperm.xlu0 %504, %v500
        %v506 = vpop.permute.xlu0 %505
        %v507 = vperm.slane %v454, 7
        %v508 = vlaneseq
        %v509 = vshrl.u32 %v508, 7
        %511 = vset.pattern.permute.xlu0 %v509
        %512 = vperm.xlu0 %511, %v507
        %v513 = vpop.permute.xlu0 %512
        %vm514 = vcmp.eq.s32.totalorder %v457, %v464
        %vm515 = vcmp.eq.s32.totalorder %v457, %v471
        %vm516 = vcmp.eq.s32.totalorder %v457, %v478
        %vm517 = vcmp.eq.s32.totalorder %v457, %v485
        %vm518 = vcmp.eq.s32.totalorder %v457, %v492
        %vm519 = vcmp.eq.s32.totalorder %v457, %v499
        %vm520 = vcmp.eq.s32.totalorder %v457, %v506
        %vm521 = vcmp.eq.s32.totalorder %v457, %v513
        %v522 = vsel %vm514, 1, 0
        %v523 = vsel %vm515, 1, 0
        %v524 = vsel %vm516, 1, 0
        %v525 = vsel %vm517, 1, 0
        %v526 = vsel %vm518, 1, 0
        %v527 = vsel %vm519, 1, 0
        %v528 = vsel %vm520, 1, 0
        %v529 = vsel %vm521, 1, 0
        %v530 = vcvt.s32.f32 %v522
        %v531 = vcvt.s32.f32 %v523
        %v532 = vcvt.s32.f32 %v524
        %v533 = vcvt.s32.f32 %v525
        %v534 = vcvt.s32.f32 %v526
        %v535 = vcvt.s32.f32 %v527
        %v536 = vcvt.s32.f32 %v528
        %v537 = vcvt.s32.f32 %v529
        %v538 = vld [vmem:[#allocation2] sm:$0x1f]
        %v539 = vld [vmem:[#allocation2 + $0x8] sm:$0x1f]
        %v540 = vld [vmem:[#allocation2 + $0x10] sm:$0x1f]
        %v541 = vld [vmem:[#allocation2 + $0x18] sm:$0x1f]
        %v542 = vld [vmem:[#allocation2 + $0x20] sm:$0x1f]
        %v543 = vld [vmem:[#allocation2 + $0x28] sm:$0x1f]
        %v544 = vld [vmem:[#allocation2 + $0x30] sm:$0x1f]
        %v545 = vld [vmem:[#allocation2 + $0x38] sm:$0x1f]
        %vm546 = vcmask 64512
        %v548 = vsel %vm546, %v530, 0
        %550 = vmatpush.msra.mxu0 0.0
        %551 = vmatpush.msra.mxu0 0.0
        %552 = vmatpush.msra.mxu0 0.0
        %553 = vmatpush.msra.mxu0 0.0
        %554 = vmatpush.msra.mxu0 0.0
        %555 = vmatpush.msra.mxu0 0.0
        %556 = vmatpush.msra.mxu0 0.0
        %557 = vmatpush.msra.mxu0 0.0
        %558 = vmatpush.msra.mxu0 0.0
        %559 = vmatpush.msra.mxu0 0.0
        %560 = vmatpush.msra.mxu0 0.0
        %561 = vmatpush.msra.mxu0 0.0
        %562 = vmatpush.msra.mxu0 0.0
        %563 = vmatpush.msra.mxu0 0.0
        %564 = vmatpush.msra.mxu0 0.0
        %565 = vmatpush.msra.mxu0 %v360
        %566 = vmatmul.f32.gmra.mxu0 %v548
        %v567 = vpop.f32.mrf.mxu0
        %v568 = vadd.f32 0.0, %v567
        %569 = vdwg.mxu0
        %v571 = vsel %vm546, %v531, 0
        %573 = vmatpush.msra.mxu0 0.0
        %574 = vmatpush.msra.mxu0 0.0
        %575 = vmatpush.msra.mxu0 0.0
        %576 = vmatpush.msra.mxu0 0.0
        %577 = vmatpush.msra.mxu0 0.0
        %578 = vmatpush.msra.mxu0 0.0
        %579 = vmatpush.msra.mxu0 0.0
        %580 = vmatpush.msra.mxu0 0.0
        %581 = vmatpush.msra.mxu0 0.0
        %582 = vmatpush.msra.mxu0 0.0
        %583 = vmatpush.msra.mxu0 0.0
        %584 = vmatpush.msra.mxu0 0.0
        %585 = vmatpush.msra.mxu0 0.0
        %586 = vmatpush.msra.mxu0 0.0
        %587 = vmatpush.msra.mxu0 0.0
        %588 = vmatpush.msra.mxu0 %v361
        %589 = vmatmul.f32.gmra.mxu0 %v571
        %v590 = vpop.f32.mrf.mxu0
        %v591 = vadd.f32 0.0, %v590
        %592 = vdwg.mxu0
        %v594 = vsel %vm546, %v532, 0
        %596 = vmatpush.msra.mxu0 0.0
        %597 = vmatpush.msra.mxu0 0.0
        %598 = vmatpush.msra.mxu0 0.0
        %599 = vmatpush.msra.mxu0 0.0
        %600 = vmatpush.msra.mxu0 0.0
        %601 = vmatpush.msra.mxu0 0.0
        %602 = vmatpush.msra.mxu0 0.0
        %603 = vmatpush.msra.mxu0 0.0
        %604 = vmatpush.msra.mxu0 0.0
        %605 = vmatpush.msra.mxu0 0.0
        %606 = vmatpush.msra.mxu0 0.0
        %607 = vmatpush.msra.mxu0 0.0
        %608 = vmatpush.msra.mxu0 0.0
        %609 = vmatpush.msra.mxu0 0.0
        %610 = vmatpush.msra.mxu0 0.0
        %611 = vmatpush.msra.mxu0 %v362
        %612 = vmatmul.f32.gmra.mxu0 %v594
        %v613 = vpop.f32.mrf.mxu0
        %v614 = vadd.f32 0.0, %v613
        %615 = vdwg.mxu0
        %v617 = vsel %vm546, %v533, 0
        %619 = vmatpush.msra.mxu0 0.0
        %620 = vmatpush.msra.mxu0 0.0
        %621 = vmatpush.msra.mxu0 0.0
        %622 = vmatpush.msra.mxu0 0.0
        %623 = vmatpush.msra.mxu0 0.0
        %624 = vmatpush.msra.mxu0 0.0
        %625 = vmatpush.msra.mxu0 0.0
        %626 = vmatpush.msra.mxu0 0.0
        %627 = vmatpush.msra.mxu0 0.0
        %628 = vmatpush.msra.mxu0 0.0
        %629 = vmatpush.msra.mxu0 0.0
        %630 = vmatpush.msra.mxu0 0.0
        %631 = vmatpush.msra.mxu0 0.0
        %632 = vmatpush.msra.mxu0 0.0
        %633 = vmatpush.msra.mxu0 0.0
        %634 = vmatpush.msra.mxu0 %v363
        %635 = vmatmul.f32.gmra.mxu0 %v617
        %v636 = vpop.f32.mrf.mxu0
        %v637 = vadd.f32 0.0, %v636
        %638 = vdwg.mxu0
        %v640 = vsel %vm546, %v534, 0
        %642 = vmatpush.msra.mxu0 0.0
        %643 = vmatpush.msra.mxu0 0.0
        %644 = vmatpush.msra.mxu0 0.0
        %645 = vmatpush.msra.mxu0 0.0
        %646 = vmatpush.msra.mxu0 0.0
        %647 = vmatpush.msra.mxu0 0.0
        %648 = vmatpush.msra.mxu0 0.0
        %649 = vmatpush.msra.mxu0 0.0
        %650 = vmatpush.msra.mxu0 0.0
        %651 = vmatpush.msra.mxu0 0.0
        %652 = vmatpush.msra.mxu0 0.0
        %653 = vmatpush.msra.mxu0 0.0
        %654 = vmatpush.msra.mxu0 0.0
        %655 = vmatpush.msra.mxu0 0.0
        %656 = vmatpush.msra.mxu0 0.0
        %657 = vmatpush.msra.mxu0 %v364
        %658 = vmatmul.f32.gmra.mxu0 %v640
        %v659 = vpop.f32.mrf.mxu0
        %v660 = vadd.f32 0.0, %v659
        %661 = vdwg.mxu0
        %v663 = vsel %vm546, %v535, 0
        %665 = vmatpush.msra.mxu0 0.0
        %666 = vmatpush.msra.mxu0 0.0
        %667 = vmatpush.msra.mxu0 0.0
        %668 = vmatpush.msra.mxu0 0.0
        %669 = vmatpush.msra.mxu0 0.0
        %670 = vmatpush.msra.mxu0 0.0
        %671 = vmatpush.msra.mxu0 0.0
        %672 = vmatpush.msra.mxu0 0.0
        %673 = vmatpush.msra.mxu0 0.0
        %674 = vmatpush.msra.mxu0 0.0
        %675 = vmatpush.msra.mxu0 0.0
        %676 = vmatpush.msra.mxu0 0.0
        %677 = vmatpush.msra.mxu0 0.0
        %678 = vmatpush.msra.mxu0 0.0
        %679 = vmatpush.msra.mxu0 0.0
        %680 = vmatpush.msra.mxu0 %v365
        %681 = vmatmul.f32.gmra.mxu0 %v663
        %v682 = vpop.f32.mrf.mxu0
        %v683 = vadd.f32 0.0, %v682
        %684 = vdwg.mxu0
        %v686 = vsel %vm546, %v536, 0
        %688 = vmatpush.msra.mxu0 0.0
        %689 = vmatpush.msra.mxu0 0.0
        %690 = vmatpush.msra.mxu0 0.0
        %691 = vmatpush.msra.mxu0 0.0
        %692 = vmatpush.msra.mxu0 0.0
        %693 = vmatpush.msra.mxu0 0.0
        %694 = vmatpush.msra.mxu0 0.0
        %695 = vmatpush.msra.mxu0 0.0
        %696 = vmatpush.msra.mxu0 0.0
        %697 = vmatpush.msra.mxu0 0.0
        %698 = vmatpush.msra.mxu0 0.0
        %699 = vmatpush.msra.mxu0 0.0
        %700 = vmatpush.msra.mxu0 0.0
        %701 = vmatpush.msra.mxu0 0.0
        %702 = vmatpush.msra.mxu0 0.0
        %703 = vmatpush.msra.mxu0 %v366
        %704 = vmatmul.f32.gmra.mxu0 %v686
        %v705 = vpop.f32.mrf.mxu0
        %v706 = vadd.f32 0.0, %v705
        %707 = vdwg.mxu0
        %v709 = vsel %vm546, %v537, 0
        %711 = vmatpush.msra.mxu0 0.0
        %712 = vmatpush.msra.mxu0 0.0
        %713 = vmatpush.msra.mxu0 0.0
        %714 = vmatpush.msra.mxu0 0.0
        %715 = vmatpush.msra.mxu0 0.0
        %716 = vmatpush.msra.mxu0 0.0
        %717 = vmatpush.msra.mxu0 0.0
        %718 = vmatpush.msra.mxu0 0.0
        %719 = vmatpush.msra.mxu0 0.0
        %720 = vmatpush.msra.mxu0 0.0
        %721 = vmatpush.msra.mxu0 0.0
        %722 = vmatpush.msra.mxu0 0.0
        %723 = vmatpush.msra.mxu0 0.0
        %724 = vmatpush.msra.mxu0 0.0
        %725 = vmatpush.msra.mxu0 0.0
        %726 = vmatpush.msra.mxu0 %v367
        %727 = vmatmul.f32.gmra.mxu0 %v709
        %v728 = vpop.f32.mrf.mxu0
        %v729 = vadd.f32 0.0, %v728
        %730 = vdwg.mxu0
        %v731 = vadd.f32 %v538, %v568
        %v732 = vadd.f32 %v539, %v591
        %v733 = vadd.f32 %v540, %v614
        %v734 = vadd.f32 %v541, %v637
        %v735 = vadd.f32 %v542, %v660
        %v736 = vadd.f32 %v543, %v683
        %v737 = vadd.f32 %v544, %v706
        %v738 = vadd.f32 %v545, %v729
        %vm739 = vcmask 258048
        %740 = vst.msk [vmem:[#allocation2] sm:$0x1f] %vm739, %v731
        %741 = vst.msk [vmem:[#allocation2 + $0x8] sm:$0x1f] %vm739, %v732
        %742 = vst.msk [vmem:[#allocation2 + $0x10] sm:$0x1f] %vm739, %v733
        %743 = vst.msk [vmem:[#allocation2 + $0x18] sm:$0x1f] %vm739, %v734
        %744 = vst.msk [vmem:[#allocation2 + $0x20] sm:$0x1f] %vm739, %v735
        %745 = vst.msk [vmem:[#allocation2 + $0x28] sm:$0x1f] %vm739, %v736
        %746 = vst.msk [vmem:[#allocation2 + $0x30] sm:$0x1f] %vm739, %v737
        %747 = vst.msk [vmem:[#allocation2 + $0x38] sm:$0x1f] %vm739, %v738
        %p748 = scmp.eq.s32.totalorder %s32, 1
        // Predicated region
        $region53: #{tpu_custom_call.1} parent=43 // pred_check
          %p749 = pneg %p748
        $region54: #{tpu_custom_call.1} parent=43 // pred_check_branch
          %751 = sbr.rel (%p749) target = $region56
        $region55: #{tpu_custom_call.1} parent=43 // pred_region
          %v752 = vld [vmem:[#allocation2] sm:$0x1f]
          %v753 = vld [vmem:[#allocation2 + $0x8] sm:$0x1f]
          %v754 = vld [vmem:[#allocation2 + $0x10] sm:$0x1f]
          %v755 = vld [vmem:[#allocation2 + $0x18] sm:$0x1f]
          %v756 = vld [vmem:[#allocation2 + $0x20] sm:$0x1f]
          %v757 = vld [vmem:[#allocation2 + $0x28] sm:$0x1f]
          %v758 = vld [vmem:[#allocation2 + $0x30] sm:$0x1f]
          %v759 = vld [vmem:[#allocation2 + $0x38] sm:$0x1f]
          %v760 = vrot.slane %v359, 1
          %v761 = vrot.slane %v359, 2
          %v762 = vrot.slane %v359, 3
          %v763 = vrot.slane %v359, 4
          %v764 = vrot.slane %v359, 5
          %v765 = vrot.slane %v359, 6
          %v766 = vrot.slane %v359, 7
          %v767 = vperm.slane %v359, 0
          %v768 = vperm.slane %v760, 0
          %v769 = vperm.slane %v761, 0
          %v770 = vperm.slane %v762, 0
          %v771 = vperm.slane %v763, 0
          %v772 = vperm.slane %v764, 0
          %v773 = vperm.slane %v765, 0
          %v774 = vperm.slane %v766, 0
          %v783 = vmul.f32 %v752, %v767
          %v784 = vmul.f32 %v753, %v768
          %v785 = vmul.f32 %v754, %v769
          %v786 = vmul.f32 %v755, %v770
          %v787 = vmul.f32 %v756, %v771
          %v788 = vmul.f32 %v757, %v772
          %v789 = vmul.f32 %v758, %v773
          %v790 = vmul.f32 %v759, %v774
          %v791 = vsel %vm739, %v783, 0.0
          %792 = vadd.xlane.f32.xlu0 %v791
          %v793 = vpop.xlane.xlu0 %792
          %v794 = vsel %vm739, %v784, 0.0
          %795 = vadd.xlane.f32.xlu0 %v794
          %v796 = vpop.xlane.xlu0 %795
          %v797 = vsel %vm739, %v785, 0.0
          %798 = vadd.xlane.f32.xlu0 %v797
          %v799 = vpop.xlane.xlu0 %798
          %v800 = vsel %vm739, %v786, 0.0
          %801 = vadd.xlane.f32.xlu0 %v800
          %v802 = vpop.xlane.xlu0 %801
          %v803 = vsel %vm739, %v787, 0.0
          %804 = vadd.xlane.f32.xlu0 %v803
          %v805 = vpop.xlane.xlu0 %804
          %v806 = vsel %vm739, %v788, 0.0
          %807 = vadd.xlane.f32.xlu0 %v806
          %v808 = vpop.xlane.xlu0 %807
          %v809 = vsel %vm739, %v789, 0.0
          %810 = vadd.xlane.f32.xlu0 %v809
          %v811 = vpop.xlane.xlu0 %810
          %v812 = vsel %vm739, %v790, 0.0
          %813 = vadd.xlane.f32.xlu0 %v812
          %v814 = vpop.xlane.xlu0 %813
          %v823 = vperm.slane %v793, %v448
          %v824 = vperm.slane %v796, %v448
          %v825 = vperm.slane %v799, %v448
          %v826 = vperm.slane %v802, %v448
          %v827 = vperm.slane %v805, %v448
          %v828 = vperm.slane %v808, %v448
          %v829 = vperm.slane %v811, %v448
          %v830 = vperm.slane %v814, %v448
          %vm831 = vcmask 1041409
          %v832 = vsel %vm831, %v824, %v823
          %vm833 = vcmask 1042434
          %v834 = vsel %vm833, %v825, %v832
          %vm835 = vcmask 1043459
          %v836 = vsel %vm835, %v826, %v834
          %vm837 = vcmask 1044484
          %v838 = vsel %vm837, %v827, %v836
          %vm839 = vcmask 1045509
          %v840 = vsel %vm839, %v828, %v838
          %vm841 = vcmask 1046534
          %v842 = vsel %vm841, %v829, %v840
          %vm843 = vcmask 1047559
          %v844 = vsel %vm843, %v830, %v842
          %vm846 = vcmask 39936
          %v847 = vsel %vm846, %v844, -inf
          %848 = vmax.xlane.f32.xlu0 %v847
          %v849 = vpop.xlane.xlu0 %848
          %v851 = vperm.slane %v849, 0
          %v852 = vperm.slane %v849, 1
          %v853 = vperm.slane %v849, 2
          %v854 = vperm.slane %v849, 3
          %v855 = vperm.slane %v849, 4
          %v856 = vperm.slane %v849, 5
          %v857 = vperm.slane %v849, 6
          %v858 = vperm.slane %v849, 7
          %v867 = vsub.f32 %v793, %v851
          %v868 = vsub.f32 %v796, %v852
          %v869 = vsub.f32 %v799, %v853
          %v870 = vsub.f32 %v802, %v854
          %v871 = vsub.f32 %v805, %v855
          %v872 = vsub.f32 %v808, %v856
          %v873 = vsub.f32 %v811, %v857
          %v874 = vsub.f32 %v814, %v858
          %v875 = vmul.f32 %v867, 1.442695
          %v876 = vpow.pop %v875
          %v877 = vmul.f32 %v868, 1.442695
          %v878 = vpow.pop %v877
          %v879 = vmul.f32 %v869, 1.442695
          %v880 = vpow.pop %v879
          %v881 = vmul.f32 %v870, 1.442695
          %v882 = vpow.pop %v881
          %v883 = vmul.f32 %v871, 1.442695
          %v884 = vpow.pop %v883
          %v885 = vmul.f32 %v872, 1.442695
          %v886 = vpow.pop %v885
          %v887 = vmul.f32 %v873, 1.442695
          %v888 = vpow.pop %v887
          %v889 = vmul.f32 %v874, 1.442695
          %v890 = vpow.pop %v889
          %899 = vset.pattern.permute.xlu0 0
          %900 = vperm.xlu0 %899, %v876
          %v901 = vpop.permute.xlu0 %900
          %902 = vset.pattern.permute.xlu0 0
          %903 = vperm.xlu0 %902, %v878
          %v904 = vpop.permute.xlu0 %903
          %905 = vset.pattern.permute.xlu0 0
          %906 = vperm.xlu0 %905, %v880
          %v907 = vpop.permute.xlu0 %906
          %908 = vset.pattern.permute.xlu0 0
          %909 = vperm.xlu0 %908, %v882
          %v910 = vpop.permute.xlu0 %909
          %911 = vset.pattern.permute.xlu0 0
          %912 = vperm.xlu0 %911, %v884
          %v913 = vpop.permute.xlu0 %912
          %914 = vset.pattern.permute.xlu0 0
          %915 = vperm.xlu0 %914, %v886
          %v916 = vpop.permute.xlu0 %915
          %917 = vset.pattern.permute.xlu0 0
          %918 = vperm.xlu0 %917, %v888
          %v919 = vpop.permute.xlu0 %918
          %920 = vset.pattern.permute.xlu0 0
          %921 = vperm.xlu0 %920, %v890
          %v922 = vpop.permute.xlu0 %921
          %v923 = vperm.slane %v901, %v448
          %v924 = vperm.slane %v904, %v448
          %v925 = vperm.slane %v907, %v448
          %v926 = vperm.slane %v910, %v448
          %v927 = vperm.slane %v913, %v448
          %v928 = vperm.slane %v916, %v448
          %v929 = vperm.slane %v919, %v448
          %v930 = vperm.slane %v922, %v448
          %v931 = vsel %vm831, %v924, %v923
          %v932 = vsel %vm833, %v925, %v931
          %v933 = vsel %vm835, %v926, %v932
          %v934 = vsel %vm837, %v927, %v933
          %v935 = vsel %vm839, %v928, %v934
          %v936 = vsel %vm841, %v929, %v935
          %v937 = vsel %vm843, %v930, %v936
          %v939 = vsel %vm846, %v937, 0.0
          %940 = vadd.xlane.f32.xlu0 %v939
          %v941 = vpop.xlane.xlu0 %940
          %v943 = vperm.slane %v941, 0
          %v944 = vperm.slane %v941, 1
          %v945 = vperm.slane %v941, 2
          %v946 = vperm.slane %v941, 3
          %v947 = vperm.slane %v941, 4
          %v948 = vperm.slane %v941, 5
          %v949 = vperm.slane %v941, 6
          %v950 = vperm.slane %v941, 7
          %v959 = vrcp.pop %v943
          %v960 = vmul.f32 %v943, %v959
          %v961 = vsub.f32 1.0, %v960
          %v962 = vmul.f32 %v959, %v961
          %v963 = vadd.f32 %v959, %v962
          %vm964 = vweird.f32 %v943
          %vm965 = vweird.f32 %v959
          %vm966 = vmor %vm964, %vm965
          %v967 = vsel %vm966, %v959, %v963
          %v968 = vand.u32 2147483647, %v943
          %vm969 = vcmp.eq.f32.partialorder %v968, 8.507059e+37
          %v970 = vand.u32 %v943, 2147483648
          %v971 = vor.u32 1.1754944e-38, %v970
          %v972 = vsel %vm969, %v971, %v967
          %v973 = vmul.f32 %v876, %v972
          %v974 = vrcp.pop %v944
          %v975 = vmul.f32 %v944, %v974
          %v976 = vsub.f32 1.0, %v975
          %v977 = vmul.f32 %v974, %v976
          %v978 = vadd.f32 %v974, %v977
          %vm979 = vweird.f32 %v944
          %vm980 = vweird.f32 %v974
          %vm981 = vmor %vm979, %vm980
          %v982 = vsel %vm981, %v974, %v978
          %v983 = vand.u32 2147483647, %v944
          %vm984 = vcmp.eq.f32.partialorder %v983, 8.507059e+37
          %v985 = vand.u32 %v944, 2147483648
          %v986 = vor.u32 1.1754944e-38, %v985
          %v987 = vsel %vm984, %v986, %v982
          %v988 = vmul.f32 %v878, %v987
          %v989 = vrcp.pop %v945
          %v990 = vmul.f32 %v945, %v989
          %v991 = vsub.f32 1.0, %v990
          %v992 = vmul.f32 %v989, %v991
          %v993 = vadd.f32 %v989, %v992
          %vm994 = vweird.f32 %v945
          %vm995 = vweird.f32 %v989
          %vm996 = vmor %vm994, %vm995
          %v997 = vsel %vm996, %v989, %v993
          %v998 = vand.u32 2147483647, %v945
          %vm999 = vcmp.eq.f32.partialorder %v998, 8.507059e+37
          %v1000 = vand.u32 %v945, 2147483648
          %v1001 = vor.u32 1.1754944e-38, %v1000
          %v1002 = vsel %vm999, %v1001, %v997
          %v1003 = vmul.f32 %v880, %v1002
          %v1004 = vrcp.pop %v946
          %v1005 = vmul.f32 %v946, %v1004
          %v1006 = vsub.f32 1.0, %v1005
          %v1007 = vmul.f32 %v1004, %v1006
          %v1008 = vadd.f32 %v1004, %v1007
          %vm1009 = vweird.f32 %v946
          %vm1010 = vweird.f32 %v1004
          %vm1011 = vmor %vm1009, %vm1010
          %v1012 = vsel %vm1011, %v1004, %v1008
          %v1013 = vand.u32 2147483647, %v946
          %vm1014 = vcmp.eq.f32.partialorder %v1013, 8.507059e+37
          %v1015 = vand.u32 %v946, 2147483648
          %v1016 = vor.u32 1.1754944e-38, %v1015
          %v1017 = vsel %vm1014, %v1016, %v1012
          %v1018 = vmul.f32 %v882, %v1017
          %v1019 = vrcp.pop %v947
          %v1020 = vmul.f32 %v947, %v1019
          %v1021 = vsub.f32 1.0, %v1020
          %v1022 = vmul.f32 %v1019, %v1021
          %v1023 = vadd.f32 %v1019, %v1022
          %vm1024 = vweird.f32 %v947
          %vm1025 = vweird.f32 %v1019
          %vm1026 = vmor %vm1024, %vm1025
          %v1027 = vsel %vm1026, %v1019, %v1023
          %v1028 = vand.u32 2147483647, %v947
          %vm1029 = vcmp.eq.f32.partialorder %v1028, 8.507059e+37
          %v1030 = vand.u32 %v947, 2147483648
          %v1031 = vor.u32 1.1754944e-38, %v1030
          %v1032 = vsel %vm1029, %v1031, %v1027
          %v1033 = vmul.f32 %v884, %v1032
          %v1034 = vrcp.pop %v948
          %v1035 = vmul.f32 %v948, %v1034
          %v1036 = vsub.f32 1.0, %v1035
          %v1037 = vmul.f32 %v1034, %v1036
          %v1038 = vadd.f32 %v1034, %v1037
          %vm1039 = vweird.f32 %v948
          %vm1040 = vweird.f32 %v1034
          %vm1041 = vmor %vm1039, %vm1040
          %v1042 = vsel %vm1041, %v1034, %v1038
          %v1043 = vand.u32 2147483647, %v948
          %vm1044 = vcmp.eq.f32.partialorder %v1043, 8.507059e+37
          %v1045 = vand.u32 %v948, 2147483648
          %v1046 = vor.u32 1.1754944e-38, %v1045
          %v1047 = vsel %vm1044, %v1046, %v1042
          %v1048 = vmul.f32 %v886, %v1047
          %v1049 = vrcp.pop %v949
          %v1050 = vmul.f32 %v949, %v1049
          %v1051 = vsub.f32 1.0, %v1050
          %v1052 = vmul.f32 %v1049, %v1051
          %v1053 = vadd.f32 %v1049, %v1052
          %vm1054 = vweird.f32 %v949
          %vm1055 = vweird.f32 %v1049
          %vm1056 = vmor %vm1054, %vm1055
          %v1057 = vsel %vm1056, %v1049, %v1053
          %v1058 = vand.u32 2147483647, %v949
          %vm1059 = vcmp.eq.f32.partialorder %v1058, 8.507059e+37
          %v1060 = vand.u32 %v949, 2147483648
          %v1061 = vor.u32 1.1754944e-38, %v1060
          %v1062 = vsel %vm1059, %v1061, %v1057
          %v1063 = vmul.f32 %v888, %v1062
          %v1064 = vrcp.pop %v950
          %v1065 = vmul.f32 %v950, %v1064
          %v1066 = vsub.f32 1.0, %v1065
          %v1067 = vmul.f32 %v1064, %v1066
          %v1068 = vadd.f32 %v1064, %v1067
          %vm1069 = vweird.f32 %v950
          %vm1070 = vweird.f32 %v1064
          %vm1071 = vmor %vm1069, %vm1070
          %v1072 = vsel %vm1071, %v1064, %v1068
          %v1073 = vand.u32 2147483647, %v950
          %vm1074 = vcmp.eq.f32.partialorder %v1073, 8.507059e+37
          %v1075 = vand.u32 %v950, 2147483648
          %v1076 = vor.u32 1.1754944e-38, %v1075
          %v1077 = vsel %vm1074, %v1076, %v1072
          %v1078 = vmul.f32 %v890, %v1077
          %v1079 = vcvt.s32.f32 %v454
          %1081 = vset.pattern.permute.xlu0 0
          %1082 = vperm.xlu0 %1081, %v434
          %v1083 = vpop.permute.xlu0 %1082
          %v1085 = vsub.f32 %v1079, %v1083
          %v1086 = vmul.f32 %v1085, %v1085
          %v1087 = vmul.f32 %v1086, -0.5
          %v1088 = vmul.f32 %v1087, 1.442695
          %v1089 = vpow.pop %v1088
          %v1091 = vperm.slane %v1089, 0
          %v1092 = vlaneseq
          %v1093 = vshrl.u32 %v1092, 7
          %1095 = vset.pattern.permute.xlu0 %v1093
          %1096 = vperm.xlu0 %1095, %v1091
          %v1097 = vpop.permute.xlu0 %1096
          %v1098 = vperm.slane %v1089, 1
          %v1099 = vlaneseq
          %v1100 = vshrl.u32 %v1099, 7
          %1102 = vset.pattern.permute.xlu0 %v1100
          %1103 = vperm.xlu0 %1102, %v1098
          %v1104 = vpop.permute.xlu0 %1103
          %v1105 = vperm.slane %v1089, 2
          %v1106 = vlaneseq
          %v1107 = vshrl.u32 %v1106, 7
          %1109 = vset.pattern.permute.xlu0 %v1107
          %1110 = vperm.xlu0 %1109, %v1105
          %v1111 = vpop.permute.xlu0 %1110
          %v1112 = vperm.slane %v1089, 3
          %v1113 = vlaneseq
          %v1114 = vshrl.u32 %v1113, 7
          %1116 = vset.pattern.permute.xlu0 %v1114
          %1117 = vperm.xlu0 %1116, %v1112
          %v1118 = vpop.permute.xlu0 %1117
          %v1119 = vperm.slane %v1089, 4
          %v1120 = vlaneseq
          %v1121 = vshrl.u32 %v1120, 7
          %1123 = vset.pattern.permute.xlu0 %v1121
          %1124 = vperm.xlu0 %1123, %v1119
          %v1125 = vpop.permute.xlu0 %1124
          %v1126 = vperm.slane %v1089, 5
          %v1127 = vlaneseq
          %v1128 = vshrl.u32 %v1127, 7
          %1130 = vset.pattern.permute.xlu0 %v1128
          %1131 = vperm.xlu0 %1130, %v1126
          %v1132 = vpop.permute.xlu0 %1131
          %v1133 = vperm.slane %v1089, 6
          %v1134 = vlaneseq
          %v1135 = vshrl.u32 %v1134, 7
          %1137 = vset.pattern.permute.xlu0 %v1135
          %1138 = vperm.xlu0 %1137, %v1133
          %v1139 = vpop.permute.xlu0 %1138
          %v1140 = vperm.slane %v1089, 7
          %v1141 = vlaneseq
          %v1142 = vshrl.u32 %v1141, 7
          %1144 = vset.pattern.permute.xlu0 %v1142
          %1145 = vperm.xlu0 %1144, %v1140
          %v1146 = vpop.permute.xlu0 %1145
          %v1155 = vmul.f32 %v973, %v1097
          %v1156 = vmul.f32 %v988, %v1104
          %v1157 = vmul.f32 %v1003, %v1111
          %v1158 = vmul.f32 %v1018, %v1118
          %v1159 = vmul.f32 %v1033, %v1125
          %v1160 = vmul.f32 %v1048, %v1132
          %v1161 = vmul.f32 %v1063, %v1139
          %v1162 = vmul.f32 %v1078, %v1146
          %1164 = vset.pattern.permute.xlu0 0
          %1165 = vperm.xlu0 %1164, %v1155
          %v1166 = vpop.permute.xlu0 %1165
          %1169 = vset.pattern.permute.xlu0 0
          %1170 = vperm.xlu0 %1169, %v1156
          %v1171 = vpop.permute.xlu0 %1170
          %1174 = vset.pattern.permute.xlu0 0
          %1175 = vperm.xlu0 %1174, %v1157
          %v1176 = vpop.permute.xlu0 %1175
          %1179 = vset.pattern.permute.xlu0 0
          %1180 = vperm.xlu0 %1179, %v1158
          %v1181 = vpop.permute.xlu0 %1180
          %1184 = vset.pattern.permute.xlu0 0
          %1185 = vperm.xlu0 %1184, %v1159
          %v1186 = vpop.permute.xlu0 %1185
          %1189 = vset.pattern.permute.xlu0 0
          %1190 = vperm.xlu0 %1189, %v1160
          %v1191 = vpop.permute.xlu0 %1190
          %1194 = vset.pattern.permute.xlu0 0
          %1195 = vperm.xlu0 %1194, %v1161
          %v1196 = vpop.permute.xlu0 %1195
          %1199 = vset.pattern.permute.xlu0 0
          %1200 = vperm.xlu0 %1199, %v1162
          %v1201 = vpop.permute.xlu0 %1200
          %v1203 = vmul.f32 %v1166, %v752
          %v1204 = vmul.f32 %v1171, %v753
          %v1205 = vmul.f32 %v1176, %v754
          %v1206 = vmul.f32 %v1181, %v755
          %v1207 = vmul.f32 %v1186, %v756
          %v1208 = vmul.f32 %v1191, %v757
          %v1209 = vmul.f32 %v1196, %v758
          %v1210 = vmul.f32 %v1201, %v759
          %v1211 = vsel %vm739, %v1203, 0.0
          %v1212 = vrot.slane %v1211, 4
          %v1213 = vadd.f32 %v1211, %v1212
          %v1214 = vrot.slane %v1213, 2
          %v1215 = vadd.f32 %v1213, %v1214
          %v1216 = vrot.slane %v1215, 1
          %v1217 = vadd.f32 %v1215, %v1216
          %v1218 = vsel %vm739, %v1204, 0.0
          %v1219 = vrot.slane %v1218, 4
          %v1220 = vadd.f32 %v1218, %v1219
          %v1221 = vrot.slane %v1220, 2
          %v1222 = vadd.f32 %v1220, %v1221
          %v1223 = vrot.slane %v1222, 1
          %v1224 = vadd.f32 %v1222, %v1223
          %v1225 = vsel %vm739, %v1205, 0.0
          %v1226 = vrot.slane %v1225, 4
          %v1227 = vadd.f32 %v1225, %v1226
          %v1228 = vrot.slane %v1227, 2
          %v1229 = vadd.f32 %v1227, %v1228
          %v1230 = vrot.slane %v1229, 1
          %v1231 = vadd.f32 %v1229, %v1230
          %v1232 = vsel %vm739, %v1206, 0.0
          %v1233 = vrot.slane %v1232, 4
          %v1234 = vadd.f32 %v1232, %v1233
          %v1235 = vrot.slane %v1234, 2
          %v1236 = vadd.f32 %v1234, %v1235
          %v1237 = vrot.slane %v1236, 1
          %v1238 = vadd.f32 %v1236, %v1237
          %v1239 = vsel %vm739, %v1207, 0.0
          %v1240 = vrot.slane %v1239, 4
          %v1241 = vadd.f32 %v1239, %v1240
          %v1242 = vrot.slane %v1241, 2
          %v1243 = vadd.f32 %v1241, %v1242
          %v1244 = vrot.slane %v1243, 1
          %v1245 = vadd.f32 %v1243, %v1244
          %v1246 = vsel %vm739, %v1208, 0.0
          %v1247 = vrot.slane %v1246, 4
          %v1248 = vadd.f32 %v1246, %v1247
          %v1249 = vrot.slane %v1248, 2
          %v1250 = vadd.f32 %v1248, %v1249
          %v1251 = vrot.slane %v1250, 1
          %v1252 = vadd.f32 %v1250, %v1251
          %v1253 = vsel %vm739, %v1209, 0.0
          %v1254 = vrot.slane %v1253, 4
          %v1255 = vadd.f32 %v1253, %v1254
          %v1256 = vrot.slane %v1255, 2
          %v1257 = vadd.f32 %v1255, %v1256
          %v1258 = vrot.slane %v1257, 1
          %v1259 = vadd.f32 %v1257, %v1258
          %v1260 = vsel %vm739, %v1210, 0.0
          %v1261 = vrot.slane %v1260, 4
          %v1262 = vadd.f32 %v1260, %v1261
          %v1263 = vrot.slane %v1262, 2
          %v1264 = vadd.f32 %v1262, %v1263
          %v1265 = vrot.slane %v1264, 1
          %v1266 = vadd.f32 %v1264, %v1265
          %v1267 = vperm.slane %v1166, %v448
          %v1268 = vperm.slane %v1171, %v448
          %v1269 = vperm.slane %v1176, %v448
          %v1270 = vperm.slane %v1181, %v448
          %v1271 = vperm.slane %v1186, %v448
          %v1272 = vperm.slane %v1191, %v448
          %v1273 = vperm.slane %v1196, %v448
          %v1274 = vperm.slane %v1201, %v448
          %v1275 = vsel %vm831, %v1268, %v1267
          %v1276 = vsel %vm833, %v1269, %v1275
          %v1277 = vsel %vm835, %v1270, %v1276
          %v1278 = vsel %vm837, %v1271, %v1277
          %v1279 = vsel %vm839, %v1272, %v1278
          %v1280 = vsel %vm841, %v1273, %v1279
          %v1281 = vsel %vm843, %v1274, %v1280
          %1283 = vst.msk [vmem:[%s345] sm:$0xff] %vm846, %v1281
          %v1292 = vsel %vm831, %v1224, %v1217
          %v1293 = vsel %vm833, %v1231, %v1292
          %v1294 = vsel %vm835, %v1238, %v1293
          %v1295 = vsel %vm837, %v1245, %v1294
          %v1296 = vsel %vm839, %v1252, %v1295
          %v1297 = vsel %vm841, %v1259, %v1296
          %v1298 = vsel %vm843, %v1266, %v1297
          %1300 = vst.msk [vmem:[%s336] sm:$0xff] %vm376, %v1298
        $region56: #{tpu_custom_call.1} parent=43 // pred_fallthru
          _
        %p1301 = scmp.lt.s32.totalorder %s31, 1
        %s1302 = scalar_select %p1301, %s31, 1
        %s1303 = smul.addr %s1302, 8
        %s1304 = scalar_lea.vmem %s6, %s1303
        %s1305 = sand.u32 %s211, 1
        %s1306 = scalar_lea.sflag [#allocation6], %s1305
        %s1307 = sand.u32 %s211, 1
        %s1308 = smul.addr %s1307, 8
        %s1309 = scalar_lea.vmem [#allocation7], %s1308
        // Predicated region
        $region57: #{tpu_custom_call.1} parent=43 // pred_check
          %p1310 = pneg %p195
        $region58: #{tpu_custom_call.1} parent=43 // pred_check_branch
          %1312 = sbr.rel (%p1310) target = $region60
        $region59: #{tpu_custom_call.1} parent=43 // pred_region
          _
        $region60: #{tpu_custom_call.1} parent=43 // pred_fallthru
          _
        // Predicated region
        $region61: #{tpu_custom_call.1} parent=43 // pred_check
          %p1313 = pneg %p221
        $region62: #{tpu_custom_call.1} parent=43 // pred_check_branch
          %1315 = sbr.rel (%p1313) target = $region64
        $region63: #{tpu_custom_call.1} parent=43 // pred_region
          %1317 = vsyncadd %s1306, 0
          %s1318 = smul.addr %s31, 8
          %s1319 = scalar_lea.hbm %s7, %s1318
          %s1321 = sshll.u32 %s1309, 4
          %s1322 = int_to_ptr.vmem [resolvable:$true] %s1321
          %s1323 = sshll.u32 %s1319, 4
          %s1324 = int_to_ptr.hbm [resolvable:$true] %s1323
          %1326 = dma.vmem_to_hbm [thread:$0]  %s1322, 128, %s1324, %s1306
        $region64: #{tpu_custom_call.1} parent=43 // pred_fallthru
          _
      $region44: #{tpu_custom_call.1} parent=5 // pred_fallthru
        _
      %p1327 = scmp.le.s32.totalorder 2, %s22
      // Predicated region
      $region65: #{tpu_custom_call.1} parent=5 // pred_check
        %p1328 = pneg %p1327
      $region66: #{tpu_custom_call.1} parent=5 // pred_check_branch
        %1330 = sbr.rel (%p1328) target = $region68
      $region67: #{tpu_custom_call.1} parent=5 // pred_region
        %s1331 = ssub.s32 %s22, 2
        // Predicated region
        $region69: #{tpu_custom_call.1} parent=67 // pred_check
          %p1332 = pneg %p201
        $region70: #{tpu_custom_call.1} parent=67 // pred_check_branch
          %1334 = sbr.rel (%p1332) target = $region72
        $region71: #{tpu_custom_call.1} parent=67 // pred_region
          %p1335 = scmp.lt.s32.totalorder %s33, 1
          %s1336 = scalar_select %p1335, %s33, 1
          %s1337 = smul.addr %s1336, 8
          %s1338 = scalar_lea.vmem %s6, %s1337
        $region72: #{tpu_custom_call.1} parent=67 // pred_fallthru
          _
        // Predicated region
        $region73: #{tpu_custom_call.1} parent=67 // pred_check
          %p1339 = pneg %p227
        $region74: #{tpu_custom_call.1} parent=67 // pred_check_branch
          %1341 = sbr.rel (%p1339) target = $region76
        $region75: #{tpu_custom_call.1} parent=67 // pred_region
          %s1342 = sand.u32 %s212, 1
          %s1343 = scalar_lea.sflag [#allocation6], %s1342
          %s1344 = sand.u32 %s212, 1
          %s1345 = smul.addr %s1344, 8
          %s1346 = scalar_lea.vmem [#allocation7], %s1345
          %1348 = dma.done %s1343, 128
        $region76: #{tpu_custom_call.1} parent=67 // pred_fallthru
          _
      $region68: #{tpu_custom_call.1} parent=5 // pred_fallthru
        _
    $region6: #{tpu_custom_call.1} parent=1 // loop_footer
      %s26 = sadd.s32 1, %s22
    $region7: #{tpu_custom_call.1} parent=1 // loop_footer_branch
      %21 = sbr.rel target = $region3
    $region8: #{tpu_custom_call.1} parent=1 // loop_exit
      _
    %1349 = vsyncpa [#allocation5], 1
    %s1350 = scalar_lea.sflag [#allocation5], 1
    %1351 = vsyncpa %s1350, 1
    %1352 = vsyncpa [#allocation6], 1
    %s1353 = scalar_lea.sflag [#allocation6], 1
    %1354 = vsyncpa %s1353, 1

</llo_original>
